<compile_context>
chip_gen: v5e
topology: v5e:2x2
jax: 0.10.0
libtpu: 0.0.40
codegen_flags: <defaults>
</compile_context>

<pallas_src>
import functools

import jax
import jax.numpy as jnp
from jax import lax
from jax.experimental import pallas as pl
from jax.experimental.pallas import tpu as pltpu


# ---------------------------------------------------------------------------
# Kernel: one (batch b, head h) grid step.
#   q/k/v blocks       : (1, L, d_model)            -- batch b
#   per-head weights   : (1, d_k|d_v, d_model)      -- head h (via BlockSpec)
#   per-head biases    : (1, 1, d_k|d_v)
#   w_fc head slice    : (1, d_model, d_v)
#   outputs            : out (1, Lq, d_model) per b, attn/log_attn
#                        (1, 1, Lq, Lk) per (h, b)
#   scratch            : (Lq, d_model) f32 fc accumulator across heads
# ---------------------------------------------------------------------------
def _mha_kernel(
    q_ref, k_ref, v_ref,
    wq_ref, bq_ref, wk_ref, bk_ref, wv_ref, bv_ref,
    wf_ref, bf_ref, g_ref, beta_ref,
    o_ref, attn_ref, logattn_ref,
    acc_ref,
    *, n_head, matmul_dtype,
):
    h = pl.program_id(1)
    f32 = jnp.float32
    # nn.Linear semantics: y = x @ W.T  (contract both operands' last dim).
    nn_linear = (((1,), (1,)), ((), ()))

    def mm(x, w):
        return lax.dot_general(
            x.astype(matmul_dtype), w.astype(matmul_dtype),
            nn_linear, preferred_element_type=f32)

    qb = q_ref[0]                       # (Lq, D)  (also the residual)
    kb = k_ref[0]                       # (Lk, D)
    vb = v_ref[0]                       # (Lk, D)

    # Per-head projections. 1/temperature is pre-folded into wq/bq host-side.
    qh = mm(qb, wq_ref[0]) + bq_ref[0]  # (Lq, d_k)
    kh = mm(kb, wk_ref[0]) + bk_ref[0]  # (Lk, d_k)
    vh = mm(vb, wv_ref[0]) + bv_ref[0]  # (Lk, d_v)

    # scores = q @ k^T without an explicit transpose (contract d_k directly).
    s = mm(qh, kh)                      # (Lq, Lk)

    m = jnp.max(s, axis=-1, keepdims=True)
    e = jnp.exp(s - m)
    denom = jnp.sum(e, axis=-1, keepdims=True)
    attn = e / denom                    # softmax(dim=-1) -- exact divide
    log_attn = (s - m) - jnp.log(denom)  # log_softmax(dim=-1)

    attn_ref[0, 0] = attn
    logattn_ref[0, 0] = log_attn

    # TODO(synk): attention dropout (p=0.1) skipped -- eval-mode identity.
    oh = jnp.dot(attn.astype(matmul_dtype), vh.astype(matmul_dtype),
                 preferred_element_type=f32)          # (Lq, d_v)

    # Per-head contribution to fc; accumulated over the head grid axis.
    contrib = mm(oh, wf_ref[0])                        # (Lq, d_model)

    @pl.when(h == 0)
    def _():
        acc_ref[...] = jnp.zeros_like(acc_ref)

    acc_ref[...] += contrib

    @pl.when(h == n_head - 1)
    def _():
        # TODO(synk): fc dropout (p=0.1) skipped -- eval-mode identity.
        z = acc_ref[...] + bf_ref[...] + qb            # fc bias + residual
        mean = jnp.mean(z, axis=-1, keepdims=True)
        var = jnp.mean((z - mean) ** 2, axis=-1, keepdims=True)
        zn = (z - mean) * lax.rsqrt(var + 1e-5)
        o_ref[0] = zn * g_ref[...] + beta_ref[...]


# ---------------------------------------------------------------------------
# Wrapper: one pallas_call with a (batch, head) grid.
# ---------------------------------------------------------------------------
def multi_head_attention(params, q, k, v, *, n_head, d_k, d_v,
                         matmul_dtype=jnp.float32):
    sz_b, len_q, d_model = q.shape
    _, len_k, _ = k.shape

    inv_temp = 1.0 / (float(d_k) ** 0.5)

    # Head-major weight layouts (one cheap XLA reshape/transpose per call), so
    # each grid step's head slice is selected by a BlockSpec, not lane slicing.
    wq = (params["w_qs"] * inv_temp).reshape(n_head, d_k, d_model)
    bq = (params["b_qs"] * inv_temp).reshape(n_head, 1, d_k)
    wk = params["w_ks"].reshape(n_head, d_k, d_model)
    bk = params["b_ks"].reshape(n_head, 1, d_k)
    wv = params["w_vs"].reshape(n_head, d_v, d_model)
    bv = params["b_vs"].reshape(n_head, 1, d_v)
    wf = params["w_fc"].reshape(d_model, n_head, d_v).transpose(1, 0, 2)
    bf = params["b_fc"].reshape(1, d_model)
    gamma = params["ln_gamma"].reshape(1, d_model)
    beta = params["ln_beta"].reshape(1, d_model)

    kernel = functools.partial(_mha_kernel, n_head=n_head,
                               matmul_dtype=matmul_dtype)

    # batch axis parallel (v7x megacore), head axis = fc-reduction (innermost).
    grid = (sz_b, n_head)

    in_specs = [
        pl.BlockSpec((1, len_q, d_model), lambda b, h: (b, 0, 0)),   # q
        pl.BlockSpec((1, len_k, d_model), lambda b, h: (b, 0, 0)),   # k
        pl.BlockSpec((1, len_k, d_model), lambda b, h: (b, 0, 0)),   # v
        pl.BlockSpec((1, d_k, d_model),   lambda b, h: (h, 0, 0)),   # w_qs[h]
        pl.BlockSpec((1, 1, d_k),         lambda b, h: (h, 0, 0)),   # b_qs[h]
        pl.BlockSpec((1, d_k, d_model),   lambda b, h: (h, 0, 0)),   # w_ks[h]
        pl.BlockSpec((1, 1, d_k),         lambda b, h: (h, 0, 0)),   # b_ks[h]
        pl.BlockSpec((1, d_v, d_model),   lambda b, h: (h, 0, 0)),   # w_vs[h]
        pl.BlockSpec((1, 1, d_v),         lambda b, h: (h, 0, 0)),   # b_vs[h]
        pl.BlockSpec((1, d_model, d_v),   lambda b, h: (h, 0, 0)),   # w_fc[:,h]
        pl.BlockSpec((1, d_model),        lambda b, h: (0, 0)),      # b_fc
        pl.BlockSpec((1, d_model),        lambda b, h: (0, 0)),      # gamma
        pl.BlockSpec((1, d_model),        lambda b, h: (0, 0)),      # beta
    ]
    out_specs = (
        pl.BlockSpec((1, len_q, d_model), lambda b, h: (b, 0, 0)),       # out
        pl.BlockSpec((1, 1, len_q, len_k), lambda b, h: (h, b, 0, 0)),   # attn
        pl.BlockSpec((1, 1, len_q, len_k), lambda b, h: (h, b, 0, 0)),   # log_attn
    )
    out_shapes = (
        jax.ShapeDtypeStruct((sz_b, len_q, d_model), jnp.float32),
        jax.ShapeDtypeStruct((n_head, sz_b, len_q, len_k), jnp.float32),
        jax.ShapeDtypeStruct((n_head, sz_b, len_q, len_k), jnp.float32),
    )

    # Per-grid-step working set (f32 bytes), used to pick an explicit scoped
    # VMEM limit that also fits v7x's 64 MiB physical VMEM.
    blk_bytes = 4 * (
        (len_q + 2 * len_k) * d_model           # q, k, v blocks
        + (2 * d_k + 2 * d_v) * d_model         # per-head weight blocks
        + 2 * d_k + d_v + 3 * d_model           # biases / LN params
        + 2 * len_q * d_model                   # out block + fc accumulator
        + 2 * len_q * len_k                     # attn, log_attn blocks
    )
    vmem_limit = int(min(48 * 1024 * 1024, max(8 * 1024 * 1024, 4 * blk_bytes)))

    # Advisory scheduler hint.
    flops = 2 * n_head * sz_b * (
        (len_q + 2 * len_k) * d_model * max(d_k, d_v)
        + len_q * len_k * (d_k + d_v)
        + len_q * d_v * d_model)
    transcendentals = n_head * sz_b * len_q * (len_k + 1) + sz_b * len_q
    bytes_accessed = 4 * (
        sz_b * (len_q + 2 * len_k) * d_model
        + n_head * (2 * d_k + 2 * d_v) * d_model
        + sz_b * len_q * d_model
        + 2 * n_head * sz_b * len_q * len_k)

    out, attn4, logattn4 = pl.pallas_call(
        kernel,
        grid=grid,
        in_specs=in_specs,
        out_specs=out_specs,
        out_shape=out_shapes,
        scratch_shapes=[pltpu.VMEM((len_q, d_model), jnp.float32)],
        compiler_params=pltpu.CompilerParams(
            dimension_semantics=("parallel", "arbitrary"),
            vmem_limit_bytes=vmem_limit,
        ),
        cost_estimate=pl.CostEstimate(
            flops=flops,
            transcendentals=transcendentals,
            bytes_accessed=bytes_accessed,
        ),
    )(q, k, v, wq, bq, wk, bk, wv, bv, wf, bf, gamma, beta)

    # (n_head, B, Lq, Lk) -> (n_head*B, Lq, Lk): contiguous, free reshape.
    attn = attn4.reshape(n_head * sz_b, len_q, len_k)
    log_attn = logattn4.reshape(n_head * sz_b, len_q, len_k)
    return out, attn, log_attn


# ---------------------------------------------------------------------------
# Pure-JAX reference mirroring the torch module (eval mode), for a sanity check.
# ---------------------------------------------------------------------------
def mha_reference(params, q, k, v, *, n_head, d_k, d_v):
    sz_b, len_q, d_model = q.shape
    _, len_k, _ = k.shape
    temperature = float(d_k) ** 0.5

    def linear(x, w, b):
        return jnp.einsum("bld,od->blo", x, w) + b.reshape(-1)

    qp = linear(q, params["w_qs"], params["b_qs"]).reshape(sz_b, len_q, n_head, d_k)
    kp = linear(k, params["w_ks"], params["b_ks"]).reshape(sz_b, len_k, n_head, d_k)
    vp = linear(v, params["w_vs"], params["b_vs"]).reshape(sz_b, len_k, n_head, d_v)

    qh = qp.transpose(2, 0, 1, 3).reshape(n_head * sz_b, len_q, d_k)
    kh = kp.transpose(2, 0, 1, 3).reshape(n_head * sz_b, len_k, d_k)
    vh = vp.transpose(2, 0, 1, 3).reshape(n_head * sz_b, len_k, d_v)

    s = jnp.einsum("bqd,bkd->bqk", qh, kh) / temperature
    attn = jax.nn.softmax(s, axis=-1)
    log_attn = jax.nn.log_softmax(s, axis=-1)

    o = jnp.einsum("bqk,bkd->bqd", attn, vh)
    o = o.reshape(n_head, sz_b, len_q, d_v).transpose(1, 2, 0, 3)
    o = o.reshape(sz_b, len_q, n_head * d_v)
    y = jnp.einsum("blo,do->bld", o, params["w_fc"]) + params["b_fc"].reshape(-1)
    z = y + q
    mean = z.mean(-1, keepdims=True)
    var = ((z - mean) ** 2).mean(-1, keepdims=True)
    zn = (z - mean) * lax.rsqrt(var + 1e-5)
    out = zn * params["ln_gamma"].reshape(-1) + params["ln_beta"].reshape(-1)
    return out, attn, log_attn


# ---------------------------------------------------------------------------
# Deterministic parameter init (PyTorch nn.Linear layout: (out, in)).
# ---------------------------------------------------------------------------
def init_params(key, n_head, d_model, d_k, d_v):
    ks = jax.random.split(key, 5)
    std_qk = (2.0 / (d_model + d_k)) ** 0.5
    std_v = (2.0 / (d_model + d_v)) ** 0.5
    std_fc = (2.0 / (n_head * d_v + d_model)) ** 0.5  # xavier_normal_
    return {
        "w_qs": std_qk * jax.random.normal(ks[0], (n_head * d_k, d_model), jnp.float32),
        "b_qs": jnp.zeros((1, n_head * d_k), jnp.float32),
        "w_ks": std_qk * jax.random.normal(ks[1], (n_head * d_k, d_model), jnp.float32),
        "b_ks": jnp.zeros((1, n_head * d_k), jnp.float32),
        "w_vs": std_v * jax.random.normal(ks[2], (n_head * d_v, d_model), jnp.float32),
        "b_vs": jnp.zeros((1, n_head * d_v), jnp.float32),
        "w_fc": std_fc * jax.random.normal(ks[3], (d_model, n_head * d_v), jnp.float32),
        "b_fc": jnp.zeros((1, d_model), jnp.float32),
        "ln_gamma": jnp.ones((1, d_model), jnp.float32),
        "ln_beta": jnp.zeros((1, d_model), jnp.float32),
    }


if __name__ == "__main__":
    n_head, d_model, d_k, d_v = 2, 32, 16, 16
    sz_b, seq = 2, 8

    key = jax.random.PRNGKey(0)
    pk, qk, kk, vk = jax.random.split(key, 4)
    params = init_params(pk, n_head, d_model, d_k, d_v)

    q = jax.random.normal(qk, (sz_b, seq, d_model), jnp.float32)
    k = jax.random.normal(kk, (sz_b, seq, d_model), jnp.float32)
    v = jax.random.normal(vk, (sz_b, seq, d_model), jnp.float32)

    out, attn, log_attn = multi_head_attention(
        params, q, k, v, n_head=n_head, d_k=d_k, d_v=d_v
    )
    jax.block_until_ready((out, attn, log_attn))

    assert out.shape == (sz_b, seq, d_model)
    assert attn.shape == (n_head * sz_b, seq, seq)
    assert log_attn.shape == (n_head * sz_b, seq, seq)
    assert bool(jnp.all(jnp.isfinite(out)))

    ref_out, ref_attn, ref_log_attn = mha_reference(
        params, q, k, v, n_head=n_head, d_k=d_k, d_v=d_v
    )
    assert bool(jnp.allclose(out, ref_out, atol=1e-2, rtol=1e-2))
    assert bool(jnp.allclose(attn, ref_attn, atol=1e-2, rtol=1e-2))
    assert bool(jnp.allclose(log_attn, ref_log_attn, atol=1e-2, rtol=1e-2))

    print("KERNEL_OK")
</pallas_src>

<mosaic_0001>
module attributes {stable_mosaic.version = 11 : i64} {
  func.func @_mha_kernel(%arg0: i32, %arg1: i32, %arg2: memref<1x8x32xf32, #tpu.memory_space<vmem>>, %arg3: memref<1x8x32xf32, #tpu.memory_space<vmem>>, %arg4: memref<1x8x32xf32, #tpu.memory_space<vmem>>, %arg5: memref<1x16x32xf32, #tpu.memory_space<vmem>>, %arg6: memref<1x1x16xf32, #tpu.memory_space<vmem>>, %arg7: memref<1x16x32xf32, #tpu.memory_space<vmem>>, %arg8: memref<1x1x16xf32, #tpu.memory_space<vmem>>, %arg9: memref<1x16x32xf32, #tpu.memory_space<vmem>>, %arg10: memref<1x1x16xf32, #tpu.memory_space<vmem>>, %arg11: memref<1x32x16xf32, #tpu.memory_space<vmem>>, %arg12: memref<1x32xf32, #tpu.memory_space<vmem>>, %arg13: memref<1x32xf32, #tpu.memory_space<vmem>>, %arg14: memref<1x32xf32, #tpu.memory_space<vmem>>, %arg15: memref<1x8x32xf32, #tpu.memory_space<vmem>>, %arg16: memref<1x1x8x8xf32, #tpu.memory_space<vmem>>, %arg17: memref<1x1x8x8xf32, #tpu.memory_space<vmem>>, %arg18: memref<8x32xf32, #tpu.memory_space<vmem>>) attributes {dimension_semantics = [#tpu.dimension_semantics<parallel>, #tpu.dimension_semantics<arbitrary>], iteration_bounds = array<i64: 2, 2>, scalar_prefetch = 0 : i64, scratch_operands = 1 : i64, tpu.core_type = #tpu.core_type<tc>, window_params = [{transform_indices = @transform_0, window_bounds = array<i64: 1, 8, 32>}, {transform_indices = @transform_1, window_bounds = array<i64: 1, 8, 32>}, {transform_indices = @transform_2, window_bounds = array<i64: 1, 8, 32>}, {transform_indices = @transform_3, window_bounds = array<i64: 1, 16, 32>}, {transform_indices = @transform_4, window_bounds = array<i64: 1, 1, 16>}, {transform_indices = @transform_5, window_bounds = array<i64: 1, 16, 32>}, {transform_indices = @transform_6, window_bounds = array<i64: 1, 1, 16>}, {transform_indices = @transform_7, window_bounds = array<i64: 1, 16, 32>}, {transform_indices = @transform_8, window_bounds = array<i64: 1, 1, 16>}, {transform_indices = @transform_9, window_bounds = array<i64: 1, 32, 16>}, {pipeline_mode = #tpu.pipeline_mode<synchronous>, transform_indices = @transform_10, window_bounds = array<i64: 1, 32>}, {pipeline_mode = #tpu.pipeline_mode<synchronous>, transform_indices = @transform_11, window_bounds = array<i64: 1, 32>}, {pipeline_mode = #tpu.pipeline_mode<synchronous>, transform_indices = @transform_12, window_bounds = array<i64: 1, 32>}, {transform_indices = @transform_13, window_bounds = array<i64: 1, 8, 32>}, {transform_indices = @transform_14, window_bounds = array<i64: 1, 1, 8, 8>}, {transform_indices = @transform_15, window_bounds = array<i64: 1, 1, 8, 8>}]} {
    %c0 = arith.constant 0 : index
    %c0_0 = arith.constant 0 : index
    %c0_1 = arith.constant 0 : index
    %0 = vector.load %arg2[%c0, %c0_0, %c0_1] : memref<1x8x32xf32, #tpu.memory_space<vmem>>, vector<1x8x32xf32>
    %1 = vector.shape_cast %0 : vector<1x8x32xf32> to vector<8x32xf32>
    %c0_2 = arith.constant 0 : index
    %c0_3 = arith.constant 0 : index
    %c0_4 = arith.constant 0 : index
    %2 = vector.load %arg3[%c0_2, %c0_3, %c0_4] : memref<1x8x32xf32, #tpu.memory_space<vmem>>, vector<1x8x32xf32>
    %3 = vector.shape_cast %2 : vector<1x8x32xf32> to vector<8x32xf32>
    %c0_5 = arith.constant 0 : index
    %c0_6 = arith.constant 0 : index
    %c0_7 = arith.constant 0 : index
    %4 = vector.load %arg4[%c0_5, %c0_6, %c0_7] : memref<1x8x32xf32, #tpu.memory_space<vmem>>, vector<1x8x32xf32>
    %5 = vector.shape_cast %4 : vector<1x8x32xf32> to vector<8x32xf32>
    %c0_8 = arith.constant 0 : index
    %c0_9 = arith.constant 0 : index
    %c0_10 = arith.constant 0 : index
    %6 = vector.load %arg5[%c0_8, %c0_9, %c0_10] : memref<1x16x32xf32, #tpu.memory_space<vmem>>, vector<1x16x32xf32>
    %7 = vector.shape_cast %6 : vector<1x16x32xf32> to vector<16x32xf32>
    %cst = arith.constant dense<0.000000e+00> : vector<8x16xf32>
    %8 = tpu.matmul %1, %7, %cst {dimension_numbers = #tpu.dot_dimension_numbers<[1], [1], [0], [0], [0, 0, 1, 0], [], []>} : vector<8x32xf32>, vector<16x32xf32>, vector<8x16xf32> -> vector<8x16xf32>
    %c0_11 = arith.constant 0 : index
    %c0_12 = arith.constant 0 : index
    %c0_13 = arith.constant 0 : index
    %9 = vector.load %arg6[%c0_11, %c0_12, %c0_13] : memref<1x1x16xf32, #tpu.memory_space<vmem>>, vector<1x1x16xf32>
    %10 = vector.shape_cast %9 : vector<1x1x16xf32> to vector<1x16xf32>
    %11 = vector.broadcast %10 : vector<1x16xf32> to vector<8x16xf32>
    %12 = arith.addf %8, %11 : vector<8x16xf32>
    %c0_14 = arith.constant 0 : index
    %c0_15 = arith.constant 0 : index
    %c0_16 = arith.constant 0 : index
    %13 = vector.load %arg7[%c0_14, %c0_15, %c0_16] : memref<1x16x32xf32, #tpu.memory_space<vmem>>, vector<1x16x32xf32>
    %14 = vector.shape_cast %13 : vector<1x16x32xf32> to vector<16x32xf32>
    %cst_17 = arith.constant dense<0.000000e+00> : vector<8x16xf32>
    %15 = tpu.matmul %3, %14, %cst_17 {dimension_numbers = #tpu.dot_dimension_numbers<[1], [1], [0], [0], [0, 0, 1, 0], [], []>} : vector<8x32xf32>, vector<16x32xf32>, vector<8x16xf32> -> vector<8x16xf32>
    %c0_18 = arith.constant 0 : index
    %c0_19 = arith.constant 0 : index
    %c0_20 = arith.constant 0 : index
    %16 = vector.load %arg8[%c0_18, %c0_19, %c0_20] : memref<1x1x16xf32, #tpu.memory_space<vmem>>, vector<1x1x16xf32>
    %17 = vector.shape_cast %16 : vector<1x1x16xf32> to vector<1x16xf32>
    %18 = vector.broadcast %17 : vector<1x16xf32> to vector<8x16xf32>
    %19 = arith.addf %15, %18 : vector<8x16xf32>
    %c0_21 = arith.constant 0 : index
    %c0_22 = arith.constant 0 : index
    %c0_23 = arith.constant 0 : index
    %20 = vector.load %arg9[%c0_21, %c0_22, %c0_23] : memref<1x16x32xf32, #tpu.memory_space<vmem>>, vector<1x16x32xf32>
    %21 = vector.shape_cast %20 : vector<1x16x32xf32> to vector<16x32xf32>
    %cst_24 = arith.constant dense<0.000000e+00> : vector<8x16xf32>
    %22 = tpu.matmul %5, %21, %cst_24 {dimension_numbers = #tpu.dot_dimension_numbers<[1], [1], [0], [0], [0, 0, 1, 0], [], []>} : vector<8x32xf32>, vector<16x32xf32>, vector<8x16xf32> -> vector<8x16xf32>
    %c0_25 = arith.constant 0 : index
    %c0_26 = arith.constant 0 : index
    %c0_27 = arith.constant 0 : index
    %23 = vector.load %arg10[%c0_25, %c0_26, %c0_27] : memref<1x1x16xf32, #tpu.memory_space<vmem>>, vector<1x1x16xf32>
    %24 = vector.shape_cast %23 : vector<1x1x16xf32> to vector<1x16xf32>
    %25 = vector.broadcast %24 : vector<1x16xf32> to vector<8x16xf32>
    %26 = arith.addf %22, %25 : vector<8x16xf32>
    %cst_28 = arith.constant dense<0.000000e+00> : vector<8x8xf32>
    %27 = tpu.matmul %12, %19, %cst_28 {dimension_numbers = #tpu.dot_dimension_numbers<[1], [1], [0], [0], [0, 0, 1, 0], [], []>} : vector<8x16xf32>, vector<8x16xf32>, vector<8x8xf32> -> vector<8x8xf32>
    %cst_29 = arith.constant dense<0xFF800000> : vector<8xf32>
    %28 = vector.multi_reduction <maximumf>, %27, %cst_29 [1] : vector<8x8xf32> to vector<8xf32>
    %29 = vector.shape_cast %28 : vector<8xf32> to vector<8x1xf32>
    %30 = vector.broadcast %29 : vector<8x1xf32> to vector<8x8xf32>
    %31 = arith.subf %27, %30 : vector<8x8xf32>
    %32 = math.exp %31 : vector<8x8xf32>
    %cst_30 = arith.constant dense<0.000000e+00> : vector<8xf32>
    %33 = vector.multi_reduction <add>, %32, %cst_30 [1] : vector<8x8xf32> to vector<8xf32>
    %34 = vector.shape_cast %33 : vector<8xf32> to vector<8x1xf32>
    %35 = vector.broadcast %34 : vector<8x1xf32> to vector<8x8xf32>
    %36 = arith.divf %32, %35 : vector<8x8xf32>
    %37 = vector.broadcast %29 : vector<8x1xf32> to vector<8x8xf32>
    %38 = arith.subf %27, %37 : vector<8x8xf32>
    %39 = math.log %34 : vector<8x1xf32>
    %40 = vector.broadcast %39 : vector<8x1xf32> to vector<8x8xf32>
    %41 = arith.subf %38, %40 : vector<8x8xf32>
    %c0_31 = arith.constant 0 : index
    %c0_32 = arith.constant 0 : index
    %c0_33 = arith.constant 0 : index
    %c0_34 = arith.constant 0 : index
    %42 = vector.load %arg16[%c0_31, %c0_32, %c0_33, %c0_34] : memref<1x1x8x8xf32, #tpu.memory_space<vmem>>, vector<1x1x8x8xf32>
    %43 = vector.shape_cast %42 : vector<1x1x8x8xf32> to vector<8x8xf32>
    %44 = vector.shape_cast %36 : vector<8x8xf32> to vector<1x1x8x8xf32>
    tpu.vector_store %arg16[%c0_31, %c0_32, %c0_33, %c0_34], %44 {strides = array<i32>} : memref<1x1x8x8xf32, #tpu.memory_space<vmem>>, vector<1x1x8x8xf32>,
    %c0_35 = arith.constant 0 : index
    %c0_36 = arith.constant 0 : index
    %c0_37 = arith.constant 0 : index
    %c0_38 = arith.constant 0 : index
    %45 = vector.load %arg17[%c0_35, %c0_36, %c0_37, %c0_38] : memref<1x1x8x8xf32, #tpu.memory_space<vmem>>, vector<1x1x8x8xf32>
    %46 = vector.shape_cast %45 : vector<1x1x8x8xf32> to vector<8x8xf32>
    %47 = vector.shape_cast %41 : vector<8x8xf32> to vector<1x1x8x8xf32>
    tpu.vector_store %arg17[%c0_35, %c0_36, %c0_37, %c0_38], %47 {strides = array<i32>} : memref<1x1x8x8xf32, #tpu.memory_space<vmem>>, vector<1x1x8x8xf32>,
    %cst_39 = arith.constant dense<0.000000e+00> : vector<8x16xf32>
    %48 = tpu.matmul %36, %26, %cst_39 {dimension_numbers = #tpu.dot_dimension_numbers<[1], [0], [0], [1], [0, 0, 1, 1], [], []>} : vector<8x8xf32>, vector<8x16xf32>, vector<8x16xf32> -> vector<8x16xf32>
    %c0_40 = arith.constant 0 : index
    %c0_41 = arith.constant 0 : index
    %c0_42 = arith.constant 0 : index
    %49 = vector.load %arg11[%c0_40, %c0_41, %c0_42] : memref<1x32x16xf32, #tpu.memory_space<vmem>>, vector<1x32x16xf32>
    %50 = vector.shape_cast %49 : vector<1x32x16xf32> to vector<32x16xf32>
    %cst_43 = arith.constant dense<0.000000e+00> : vector<8x32xf32>
    %51 = tpu.matmul %48, %50, %cst_43 {dimension_numbers = #tpu.dot_dimension_numbers<[1], [1], [0], [0], [0, 0, 1, 0], [], []>} : vector<8x16xf32>, vector<32x16xf32>, vector<8x32xf32> -> vector<8x32xf32>
    %c0_i32 = arith.constant 0 : i32
    %52 = arith.cmpi eq, %arg1, %c0_i32 : i32
    %53 = arith.extui %52 : i1 to i32
    %c0_i32_44 = arith.constant 0 : i32
    %54 = arith.cmpi ne, %53, %c0_i32_44 : i32
    scf.if %54 {
      %cst_50 = arith.constant 0.000000e+00 : f32
      %61 = vector.broadcast %cst_50 : f32 to vector<8x32xf32>
      %c0_51 = arith.constant 0 : index
      %c0_52 = arith.constant 0 : index
      %62 = vector.load %arg18[%c0_51, %c0_52] : memref<8x32xf32, #tpu.memory_space<vmem>>, vector<8x32xf32>
      tpu.vector_store %arg18[%c0_51, %c0_52], %61 {strides = array<i32>} : memref<8x32xf32, #tpu.memory_space<vmem>>, vector<8x32xf32>,
    } else {
    }
    %c0_45 = arith.constant 0 : index
    %c0_46 = arith.constant 0 : index
    %55 = vector.load %arg18[%c0_45, %c0_46] : memref<8x32xf32, #tpu.memory_space<vmem>>, vector<8x32xf32>
    %56 = arith.addf %55, %51 : vector<8x32xf32>
    %c0_47 = arith.constant 0 : index
    %c0_48 = arith.constant 0 : index
    %57 = vector.load %arg18[%c0_47, %c0_48] : memref<8x32xf32, #tpu.memory_space<vmem>>, vector<8x32xf32>
    tpu.vector_store %arg18[%c0_47, %c0_48], %56 {strides = array<i32>} : memref<8x32xf32, #tpu.memory_space<vmem>>, vector<8x32xf32>,
    %c1_i32 = arith.constant 1 : i32
    %58 = arith.cmpi eq, %arg1, %c1_i32 : i32
    %59 = arith.extui %58 : i1 to i32
    %c0_i32_49 = arith.constant 0 : i32
    %60 = arith.cmpi ne, %59, %c0_i32_49 : i32
    scf.if %60 {
      %c0_50 = arith.constant 0 : index
      %c0_51 = arith.constant 0 : index
      %61 = vector.load %arg18[%c0_50, %c0_51] : memref<8x32xf32, #tpu.memory_space<vmem>>, vector<8x32xf32>
      %c0_52 = arith.constant 0 : index
      %c0_53 = arith.constant 0 : index
      %62 = vector.load %arg12[%c0_52, %c0_53] : memref<1x32xf32, #tpu.memory_space<vmem>>, vector<1x32xf32>
      %63 = vector.broadcast %62 : vector<1x32xf32> to vector<8x32xf32>
      %64 = arith.addf %61, %63 : vector<8x32xf32>
      %65 = arith.addf %64, %1 : vector<8x32xf32>
      %cst_54 = arith.constant dense<0.000000e+00> : vector<8xf32>
      %66 = vector.multi_reduction <add>, %65, %cst_54 [1] : vector<8x32xf32> to vector<8xf32>
      %67 = vector.shape_cast %66 : vector<8xf32> to vector<8x1xf32>
      %cst_55 = arith.constant 3.200000e+01 : f32
      %68 = vector.broadcast %cst_55 : f32 to vector<8x1xf32>
      %69 = arith.divf %67, %68 : vector<8x1xf32>
      %70 = vector.broadcast %69 : vector<8x1xf32> to vector<8x32xf32>
      %71 = arith.subf %65, %70 : vector<8x32xf32>
      %72 = arith.mulf %71, %71 : vector<8x32xf32>
      %cst_56 = arith.constant dense<0.000000e+00> : vector<8xf32>
      %73 = vector.multi_reduction <add>, %72, %cst_56 [1] : vector<8x32xf32> to vector<8xf32>
      %74 = vector.shape_cast %73 : vector<8xf32> to vector<8x1xf32>
      %cst_57 = arith.constant 3.200000e+01 : f32
      %75 = vector.broadcast %cst_57 : f32 to vector<8x1xf32>
      %76 = arith.divf %74, %75 : vector<8x1xf32>
      %77 = vector.broadcast %69 : vector<8x1xf32> to vector<8x32xf32>
      %78 = arith.subf %65, %77 : vector<8x32xf32>
      %cst_58 = arith.constant 9.99999974E-6 : f32
      %79 = vector.broadcast %cst_58 : f32 to vector<8x1xf32>
      %80 = arith.addf %76, %79 : vector<8x1xf32>
      %81 = math.rsqrt %80 : vector<8x1xf32>
      %82 = vector.broadcast %81 : vector<8x1xf32> to vector<8x32xf32>
      %83 = arith.mulf %78, %82 : vector<8x32xf32>
      %c0_59 = arith.constant 0 : index
      %c0_60 = arith.constant 0 : index
      %84 = vector.load %arg13[%c0_59, %c0_60] : memref<1x32xf32, #tpu.memory_space<vmem>>, vector<1x32xf32>
      %85 = vector.broadcast %84 : vector<1x32xf32> to vector<8x32xf32>
      %86 = arith.mulf %83, %85 : vector<8x32xf32>
      %c0_61 = arith.constant 0 : index
      %c0_62 = arith.constant 0 : index
      %87 = vector.load %arg14[%c0_61, %c0_62] : memref<1x32xf32, #tpu.memory_space<vmem>>, vector<1x32xf32>
      %88 = vector.broadcast %87 : vector<1x32xf32> to vector<8x32xf32>
      %89 = arith.addf %86, %88 : vector<8x32xf32>
      %c0_63 = arith.constant 0 : index
      %c0_64 = arith.constant 0 : index
      %c0_65 = arith.constant 0 : index
      %90 = vector.load %arg15[%c0_63, %c0_64, %c0_65] : memref<1x8x32xf32, #tpu.memory_space<vmem>>, vector<1x8x32xf32>
      %91 = vector.shape_cast %90 : vector<1x8x32xf32> to vector<8x32xf32>
      %92 = vector.shape_cast %89 : vector<8x32xf32> to vector<1x8x32xf32>
      tpu.vector_store %arg15[%c0_63, %c0_64, %c0_65], %92 {strides = array<i32>} : memref<1x8x32xf32, #tpu.memory_space<vmem>>, vector<1x8x32xf32>,
    } else {
    }
    return
  }
  func.func @transform_0(%arg0: i32, %arg1: i32) -> (i32, i32, i32) {
    %c0_i32 = arith.constant 0 : i32
    %c0_i32_0 = arith.constant 0 : i32
    %c0_i32_1 = arith.constant 0 : i32
    return %arg0, %c0_i32, %c0_i32_0 : i32, i32, i32
  }
  func.func @transform_1(%arg0: i32, %arg1: i32) -> (i32, i32, i32) {
    %c0_i32 = arith.constant 0 : i32
    %c0_i32_0 = arith.constant 0 : i32
    %c0_i32_1 = arith.constant 0 : i32
    return %arg0, %c0_i32, %c0_i32_0 : i32, i32, i32
  }
  func.func @transform_2(%arg0: i32, %arg1: i32) -> (i32, i32, i32) {
    %c0_i32 = arith.constant 0 : i32
    %c0_i32_0 = arith.constant 0 : i32
    %c0_i32_1 = arith.constant 0 : i32
    return %arg0, %c0_i32, %c0_i32_0 : i32, i32, i32
  }
  func.func @transform_3(%arg0: i32, %arg1: i32) -> (i32, i32, i32) {
    %c0_i32 = arith.constant 0 : i32
    %c0_i32_0 = arith.constant 0 : i32
    %c0_i32_1 = arith.constant 0 : i32
    return %arg1, %c0_i32, %c0_i32_0 : i32, i32, i32
  }
  func.func @transform_4(%arg0: i32, %arg1: i32) -> (i32, i32, i32) {
    %c0_i32 = arith.constant 0 : i32
    %c0_i32_0 = arith.constant 0 : i32
    %c0_i32_1 = arith.constant 0 : i32
    return %arg1, %c0_i32, %c0_i32_0 : i32, i32, i32
  }
  func.func @transform_5(%arg0: i32, %arg1: i32) -> (i32, i32, i32) {
    %c0_i32 = arith.constant 0 : i32
    %c0_i32_0 = arith.constant 0 : i32
    %c0_i32_1 = arith.constant 0 : i32
    return %arg1, %c0_i32, %c0_i32_0 : i32, i32, i32
  }
  func.func @transform_6(%arg0: i32, %arg1: i32) -> (i32, i32, i32) {
    %c0_i32 = arith.constant 0 : i32
    %c0_i32_0 = arith.constant 0 : i32
    %c0_i32_1 = arith.constant 0 : i32
    return %arg1, %c0_i32, %c0_i32_0 : i32, i32, i32
  }
  func.func @transform_7(%arg0: i32, %arg1: i32) -> (i32, i32, i32) {
    %c0_i32 = arith.constant 0 : i32
    %c0_i32_0 = arith.constant 0 : i32
    %c0_i32_1 = arith.constant 0 : i32
    return %arg1, %c0_i32, %c0_i32_0 : i32, i32, i32
  }
  func.func @transform_8(%arg0: i32, %arg1: i32) -> (i32, i32, i32) {
    %c0_i32 = arith.constant 0 : i32
    %c0_i32_0 = arith.constant 0 : i32
    %c0_i32_1 = arith.constant 0 : i32
    return %arg1, %c0_i32, %c0_i32_0 : i32, i32, i32
  }
  func.func @transform_9(%arg0: i32, %arg1: i32) -> (i32, i32, i32) {
    %c0_i32 = arith.constant 0 : i32
    %c0_i32_0 = arith.constant 0 : i32
    %c0_i32_1 = arith.constant 0 : i32
    return %arg1, %c0_i32, %c0_i32_0 : i32, i32, i32
  }
  func.func @transform_10(%arg0: i32, %arg1: i32) -> (i32, i32) {
    %c0_i32 = arith.constant 0 : i32
    %c0_i32_0 = arith.constant 0 : i32
    %c0_i32_1 = arith.constant 0 : i32
    return %c0_i32, %c0_i32_0 : i32, i32
  }
  func.func @transform_11(%arg0: i32, %arg1: i32) -> (i32, i32) {
    %c0_i32 = arith.constant 0 : i32
    %c0_i32_0 = arith.constant 0 : i32
    %c0_i32_1 = arith.constant 0 : i32
    return %c0_i32, %c0_i32_0 : i32, i32
  }
  func.func @transform_12(%arg0: i32, %arg1: i32) -> (i32, i32) {
    %c0_i32 = arith.constant 0 : i32
    %c0_i32_0 = arith.constant 0 : i32
    %c0_i32_1 = arith.constant 0 : i32
    return %c0_i32, %c0_i32_0 : i32, i32
  }
  func.func @transform_13(%arg0: i32, %arg1: i32) -> (i32, i32, i32) {
    %c0_i32 = arith.constant 0 : i32
    %c0_i32_0 = arith.constant 0 : i32
    %c0_i32_1 = arith.constant 0 : i32
    return %arg0, %c0_i32, %c0_i32_0 : i32, i32, i32
  }
  func.func @transform_14(%arg0: i32, %arg1: i32) -> (i32, i32, i32, i32) {
    %c0_i32 = arith.constant 0 : i32
    %c0_i32_0 = arith.constant 0 : i32
    %c0_i32_1 = arith.constant 0 : i32
    return %arg1, %arg0, %c0_i32, %c0_i32_0 : i32, i32, i32, i32
  }
  func.func @transform_15(%arg0: i32, %arg1: i32) -> (i32, i32, i32, i32) {
    %c0_i32 = arith.constant 0 : i32
    %c0_i32_0 = arith.constant 0 : i32
    %c0_i32_1 = arith.constant 0 : i32
    return %arg1, %arg0, %c0_i32, %c0_i32_0 : i32, i32, i32, i32
  }
}

</mosaic_0001>

<llo_original>
// kernel: tpu_custom_call.1
$region0: #{tpu_custom_call.1}
  #allocation0 [shape = 'u32[]', space=smem, size = 0x4, offset = 0x4, fixed_abs, tag = 'smem constant byte address 0x4 - core index']
  #allocation1 [shape = 'u32[72,128]{1,0:T(1,128)}', space=vmem, size = 0x9000, scoped, tag = 'internal scratch']
  #allocation2 [shape = 'f32[8,32]{1,0:T(8,128)}', space=vmem, size = 0x1000, scoped, tag = 'scratch operand']
  %s0 = inlined_call_operand.hbm [shape: f32[2,8,32], index: 0, kind: input, shape index: {}]
  %s1 = inlined_call_operand.hbm [shape: f32[2,8,32], index: 1, kind: input, shape index: {}]
  %s2 = inlined_call_operand.hbm [shape: f32[2,8,32], index: 2, kind: input, shape index: {}]
  %s3 = inlined_call_operand.vmem [shape: f32[2,16,32], index: 3, kind: input, shape index: {}]
  %s4 = inlined_call_operand.vmem [shape: f32[2,1,16], index: 4, kind: input, shape index: {}]
  %s5 = inlined_call_operand.vmem [shape: f32[2,16,32], index: 5, kind: input, shape index: {}]
  %s6 = inlined_call_operand.vmem [shape: f32[2,1,16], index: 6, kind: input, shape index: {}]
  %s7 = inlined_call_operand.vmem [shape: f32[2,16,32], index: 7, kind: input, shape index: {}]
  %s8 = inlined_call_operand.vmem [shape: f32[2,1,16], index: 8, kind: input, shape index: {}]
  %s9 = inlined_call_operand.vmem [shape: f32[2,32,16], index: 9, kind: input, shape index: {}]
  %s10 = inlined_call_operand.vmem [shape: f32[1,32], index: 10, kind: input, shape index: {}]
  %s11 = inlined_call_operand.vmem [shape: f32[1,32], index: 11, kind: input, shape index: {}]
  %s12 = inlined_call_operand.vmem [shape: f32[1,32], index: 12, kind: input, shape index: {}]
  %s13 = inlined_call_operand.hbm [shape: f32[2,8,32], index: 13, kind: output, shape index: {0}]
  %s14 = inlined_call_operand.hbm [shape: f32[2,2,8,8], index: 14, kind: output, shape index: {1}]
  %s15 = inlined_call_operand.hbm [shape: f32[2,2,8,8], index: 15, kind: output, shape index: {2}]
  %16 = xla_tuple %s13, %s14, %s15
  %s17 = sld [smem:[#allocation0]]
  $region121: #{tpu_custom_call.1} parent=0
    _
  %s19 = ssub.s32 1, %s17
  %s20 = scalar_select 0, %s19, %s17
  $region1: #{tpu_custom_call.1} parent=0
    #allocation3 [shape = 'u8[8192]{0}', space=vmem, size = 0x2000, scoped, tag = 'input window, operand 0']
    #allocation4 [shape = 's32[2]{0}', space=sflag, size = 0x8, scoped, tag = 'scoped memory for tpu_custom_call.1']
    #allocation5 [shape = 's32[2]{0}', space=sflag, size = 0x8, scoped, tag = 'scoped memory for tpu_custom_call.1']
    #allocation6 [shape = 'u8[8192]{0}', space=vmem, size = 0x2000, scoped, tag = 'input window, operand 1']
    #allocation7 [shape = 's32[2]{0}', space=sflag, size = 0x8, scoped, tag = 'scoped memory for tpu_custom_call.1']
    #allocation8 [shape = 'u8[8192]{0}', space=vmem, size = 0x2000, scoped, tag = 'input window, operand 2']
    #allocation9 [shape = 'u8[8192]{0}', space=vmem, size = 0x2000, scoped, tag = 'output window, operand 0']
    #allocation10 [shape = 'u8[8192]{0}', space=vmem, size = 0x2000, scoped, tag = 'output window, operand 1']
    #allocation11 [shape = 's32[2]{0}', space=sflag, size = 0x8, scoped, tag = 'scoped memory for tpu_custom_call.1']
    #allocation12 [shape = 'u8[8192]{0}', space=vmem, size = 0x2000, scoped, tag = 'output window, operand 2']
    %21 = vsyncpa [#allocation4], 0
    %s22 = scalar_lea.sflag [#allocation4], 1
    %23 = vsyncpa %s22, 0
    %24 = vsyncpa [#allocation7], 0
    %s25 = scalar_lea.sflag [#allocation7], 1
    %26 = vsyncpa %s25, 0
    %27 = vsyncpa [#allocation5], 0
    %s28 = scalar_lea.sflag [#allocation5], 1
    %29 = vsyncpa %s28, 0
    %30 = vsyncpa [#allocation11], 0
    %s31 = scalar_lea.sflag [#allocation11], 1
    %32 = vsyncpa %s31, 0
    loop: start=0, step=1, limit=6
    $region2: #{tpu_custom_call.1} parent=1 // loop_pre_header
      _
    $region3: #{tpu_custom_call.1} parent=1 // loop_header
      %s34 = sphi 0, %s38
      %p35 = scmp.ge.s32.totalorder %s34, 6
      %s41 = sphi 0, %s53
      %s42 = sphi 0, %s49
      %s43 = sphi 0, %s41
      %s44 = sphi 0, %s42
      %s45 = sphi 0, %s43
      %s46 = sphi 0, %s44
      %s56 = sphi 0, %s58
      %s59 = sphi 0, %s56
      %s60 = sphi 0, %s59
      %s76 = sphi 0, %s60
      %s82 = sphi 0, %s84
      %s85 = sphi 0, %s82
      %s86 = sphi 0, %s85
      %s102 = sphi 0, %s86
      %s108 = sphi 0, %s110
      %s111 = sphi 0, %s108
      %s112 = sphi 0, %s111
      %s128 = sphi 0, %s112
      %s134 = sphi 0, %s136
      %s137 = sphi 0, %s134
      %s138 = sphi 0, %s137
      %s154 = sphi 0, %s138
      %s160 = sphi 0, %s162
      %s163 = sphi 0, %s160
      %s164 = sphi 0, %s163
      %s180 = sphi 0, %s164
      %s186 = sphi 0, %s188
      %s189 = sphi 0, %s186
      %s190 = sphi 0, %s189
      %s206 = sphi 0, %s190
      %s212 = sphi 0, %s214
      %s215 = sphi 0, %s212
      %s216 = sphi 0, %s215
      %s232 = sphi 0, %s216
      %s238 = sphi 0, %s240
      %s241 = sphi 0, %s238
      %s242 = sphi 0, %s241
      %s258 = sphi 0, %s242
      %s264 = sphi 0, %s266
      %s267 = sphi 0, %s264
      %s268 = sphi 0, %s267
      %s284 = sphi 0, %s268
      %s290 = sphi 0, %s292
      %s293 = sphi 0, %s290
      %s294 = sphi 0, %s293
      %s310 = sphi 0, %s294
      %s314 = sphi 0, %s314
      %s316 = sphi 0, %s314
      %s317 = sphi 0, %s316
      %s331 = sphi 0, %s317
      %s335 = sphi 0, %s335
      %s337 = sphi 0, %s335
      %s338 = sphi 0, %s337
      %s352 = sphi 0, %s338
      %s356 = sphi 0, %s356
      %s358 = sphi 0, %s356
      %s359 = sphi 0, %s358
      %s373 = sphi 0, %s359
      %s379 = sphi 0, %s381
      %s382 = sphi 0, %s379
      %s383 = sphi 0, %s382
      %s399 = sphi 0, %s383
      %s407 = sphi 0, %s409
      %s410 = sphi 0, %s407
      %s411 = sphi 0, %s410
      %s427 = sphi 0, %s411
      %s435 = sphi 0, %s437
      %s438 = sphi 0, %s435
      %s439 = sphi 0, %s438
      %s455 = sphi 0, %s439
    $region4: #{tpu_custom_call.1} parent=1 // loop_header_branch
      %37 = sbr.rel (%p35) target = $region8
    $region5: #{tpu_custom_call.1} parent=1 // loop_body
      %s39 = ssub.s32 %s34, 1
      %s40 = ssub.s32 %s34, 2
      %s47 = sadd.s32 1, %s42
      %p48 = scmp.ge.s32.totalorder %s47, 2
      %s49 = scalar_select %p48, 0, %s47
      %s50 = sadd.s32 1, %s41
      %s51 = scalar_select %p48, %s50, %s41
      %p52 = scmp.ge.s32.totalorder %s51, 2
      %s53 = scalar_select %p52, 0, %s51
      %s54 = ssub.s32 %s41, %s53
      %p55 = scmp.eq.s32.totalorder %s54, 0
      %s57 = sadd.s32 %s56, 1
      %s58 = scalar_select %p55, %s56, %s57
      %p61 = pneg %p55
      %p62 = scmp.eq.s32.totalorder %s34, 3
      %p63 = por %p61, %p62
      %p64 = scmp.ne.s32.totalorder %s56, %s59
      %p65 = scmp.eq.s32.totalorder %s34, 0
      %p66 = por %p64, %p65
      %p67 = scmp.ne.s32.totalorder %s56, %s59
      %p68 = scmp.eq.s32.totalorder %s39, 3
      %p69 = por %p67, %p68
      %p70 = scmp.ne.s32.totalorder %s59, %s60
      %p71 = scmp.eq.s32.totalorder %s39, 0
      %p72 = por %p70, %p71
      %p73 = scmp.ne.s32.totalorder %s59, %s60
      %p74 = scmp.eq.s32.totalorder %s40, 3
      %p75 = por %p73, %p74
      %p77 = scmp.ne.s32.totalorder %s60, %s76
      %p78 = scmp.eq.s32.totalorder %s40, 0
      %p79 = por %p77, %p78
      %s80 = ssub.s32 %s41, %s53
      %p81 = scmp.eq.s32.totalorder %s80, 0
      %s83 = sadd.s32 %s82, 1
      %s84 = scalar_select %p81, %s82, %s83
      %p87 = pneg %p81
      %p88 = scmp.eq.s32.totalorder %s34, 3
      %p89 = por %p87, %p88
      %p90 = scmp.ne.s32.totalorder %s82, %s85
      %p91 = scmp.eq.s32.totalorder %s34, 0
      %p92 = por %p90, %p91
      %p93 = scmp.ne.s32.totalorder %s82, %s85
      %p94 = scmp.eq.s32.totalorder %s39, 3
      %p95 = por %p93, %p94
      %p96 = scmp.ne.s32.totalorder %s85, %s86
      %p97 = scmp.eq.s32.totalorder %s39, 0
      %p98 = por %p96, %p97
      %p99 = scmp.ne.s32.totalorder %s85, %s86
      %p100 = scmp.eq.s32.totalorder %s40, 3
      %p101 = por %p99, %p100
      %p103 = scmp.ne.s32.totalorder %s86, %s102
      %p104 = scmp.eq.s32.totalorder %s40, 0
      %p105 = por %p103, %p104
      %s106 = ssub.s32 %s41, %s53
      %p107 = scmp.eq.s32.totalorder %s106, 0
      %s109 = sadd.s32 %s108, 1
      %s110 = scalar_select %p107, %s108, %s109
      %p113 = pneg %p107
      %p114 = scmp.eq.s32.totalorder %s34, 3
      %p115 = por %p113, %p114
      %p116 = scmp.ne.s32.totalorder %s108, %s111
      %p117 = scmp.eq.s32.totalorder %s34, 0
      %p118 = por %p116, %p117
      %p119 = scmp.ne.s32.totalorder %s108, %s111
      %p120 = scmp.eq.s32.totalorder %s39, 3
      %p121 = por %p119, %p120
      %p122 = scmp.ne.s32.totalorder %s111, %s112
      %p123 = scmp.eq.s32.totalorder %s39, 0
      %p124 = por %p122, %p123
      %p125 = scmp.ne.s32.totalorder %s111, %s112
      %p126 = scmp.eq.s32.totalorder %s40, 3
      %p127 = por %p125, %p126
      %p129 = scmp.ne.s32.totalorder %s112, %s128
      %p130 = scmp.eq.s32.totalorder %s40, 0
      %p131 = por %p129, %p130
      %s132 = ssub.s32 %s42, %s49
      %p133 = scmp.eq.s32.totalorder %s132, 0
      %s135 = sadd.s32 %s134, 1
      %s136 = scalar_select %p133, %s134, %s135
      %p139 = pneg %p133
      %p140 = scmp.eq.s32.totalorder %s34, 3
      %p141 = por %p139, %p140
      %p142 = scmp.ne.s32.totalorder %s134, %s137
      %p143 = scmp.eq.s32.totalorder %s34, 0
      %p144 = por %p142, %p143
      %p145 = scmp.ne.s32.totalorder %s134, %s137
      %p146 = scmp.eq.s32.totalorder %s39, 3
      %p147 = por %p145, %p146
      %p148 = scmp.ne.s32.totalorder %s137, %s138
      %p149 = scmp.eq.s32.totalorder %s39, 0
      %p150 = por %p148, %p149
      %p151 = scmp.ne.s32.totalorder %s137, %s138
      %p152 = scmp.eq.s32.totalorder %s40, 3
      %p153 = por %p151, %p152
      %p155 = scmp.ne.s32.totalorder %s138, %s154
      %p156 = scmp.eq.s32.totalorder %s40, 0
      %p157 = por %p155, %p156
      %s158 = ssub.s32 %s42, %s49
      %p159 = scmp.eq.s32.totalorder %s158, 0
      %s161 = sadd.s32 %s160, 1
      %s162 = scalar_select %p159, %s160, %s161
      %p165 = pneg %p159
      %p166 = scmp.eq.s32.totalorder %s34, 3
      %p167 = por %p165, %p166
      %p168 = scmp.ne.s32.totalorder %s160, %s163
      %p169 = scmp.eq.s32.totalorder %s34, 0
      %p170 = por %p168, %p169
      %p171 = scmp.ne.s32.totalorder %s160, %s163
      %p172 = scmp.eq.s32.totalorder %s39, 3
      %p173 = por %p171, %p172
      %p174 = scmp.ne.s32.totalorder %s163, %s164
      %p175 = scmp.eq.s32.totalorder %s39, 0
      %p176 = por %p174, %p175
      %p177 = scmp.ne.s32.totalorder %s163, %s164
      %p178 = scmp.eq.s32.totalorder %s40, 3
      %p179 = por %p177, %p178
      %p181 = scmp.ne.s32.totalorder %s164, %s180
      %p182 = scmp.eq.s32.totalorder %s40, 0
      %p183 = por %p181, %p182
      %s184 = ssub.s32 %s42, %s49
      %p185 = scmp.eq.s32.totalorder %s184, 0
      %s187 = sadd.s32 %s186, 1
      %s188 = scalar_select %p185, %s186, %s187
      %p191 = pneg %p185
      %p192 = scmp.eq.s32.totalorder %s34, 3
      %p193 = por %p191, %p192
      %p194 = scmp.ne.s32.totalorder %s186, %s189
      %p195 = scmp.eq.s32.totalorder %s34, 0
      %p196 = por %p194, %p195
      %p197 = scmp.ne.s32.totalorder %s186, %s189
      %p198 = scmp.eq.s32.totalorder %s39, 3
      %p199 = por %p197, %p198
      %p200 = scmp.ne.s32.totalorder %s189, %s190
      %p201 = scmp.eq.s32.totalorder %s39, 0
      %p202 = por %p200, %p201
      %p203 = scmp.ne.s32.totalorder %s189, %s190
      %p204 = scmp.eq.s32.totalorder %s40, 3
      %p205 = por %p203, %p204
      %p207 = scmp.ne.s32.totalorder %s190, %s206
      %p208 = scmp.eq.s32.totalorder %s40, 0
      %p209 = por %p207, %p208
      %s210 = ssub.s32 %s42, %s49
      %p211 = scmp.eq.s32.totalorder %s210, 0
      %s213 = sadd.s32 %s212, 1
      %s214 = scalar_select %p211, %s212, %s213
      %p217 = pneg %p211
      %p218 = scmp.eq.s32.totalorder %s34, 3
      %p219 = por %p217, %p218
      %p220 = scmp.ne.s32.totalorder %s212, %s215
      %p221 = scmp.eq.s32.totalorder %s34, 0
      %p222 = por %p220, %p221
      %p223 = scmp.ne.s32.totalorder %s212, %s215
      %p224 = scmp.eq.s32.totalorder %s39, 3
      %p225 = por %p223, %p224
      %p226 = scmp.ne.s32.totalorder %s215, %s216
      %p227 = scmp.eq.s32.totalorder %s39, 0
      %p228 = por %p226, %p227
      %p229 = scmp.ne.s32.totalorder %s215, %s216
      %p230 = scmp.eq.s32.totalorder %s40, 3
      %p231 = por %p229, %p230
      %p233 = scmp.ne.s32.totalorder %s216, %s232
      %p234 = scmp.eq.s32.totalorder %s40, 0
      %p235 = por %p233, %p234
      %s236 = ssub.s32 %s42, %s49
      %p237 = scmp.eq.s32.totalorder %s236, 0
      %s239 = sadd.s32 %s238, 1
      %s240 = scalar_select %p237, %s238, %s239
      %p243 = pneg %p237
      %p244 = scmp.eq.s32.totalorder %s34, 3
      %p245 = por %p243, %p244
      %p246 = scmp.ne.s32.totalorder %s238, %s241
      %p247 = scmp.eq.s32.totalorder %s34, 0
      %p248 = por %p246, %p247
      %p249 = scmp.ne.s32.totalorder %s238, %s241
      %p250 = scmp.eq.s32.totalorder %s39, 3
      %p251 = por %p249, %p250
      %p252 = scmp.ne.s32.totalorder %s241, %s242
      %p253 = scmp.eq.s32.totalorder %s39, 0
      %p254 = por %p252, %p253
      %p255 = scmp.ne.s32.totalorder %s241, %s242
      %p256 = scmp.eq.s32.totalorder %s40, 3
      %p257 = por %p255, %p256
      %p259 = scmp.ne.s32.totalorder %s242, %s258
      %p260 = scmp.eq.s32.totalorder %s40, 0
      %p261 = por %p259, %p260
      %s262 = ssub.s32 %s42, %s49
      %p263 = scmp.eq.s32.totalorder %s262, 0
      %s265 = sadd.s32 %s264, 1
      %s266 = scalar_select %p263, %s264, %s265
      %p269 = pneg %p263
      %p270 = scmp.eq.s32.totalorder %s34, 3
      %p271 = por %p269, %p270
      %p272 = scmp.ne.s32.totalorder %s264, %s267
      %p273 = scmp.eq.s32.totalorder %s34, 0
      %p274 = por %p272, %p273
      %p275 = scmp.ne.s32.totalorder %s264, %s267
      %p276 = scmp.eq.s32.totalorder %s39, 3
      %p277 = por %p275, %p276
      %p278 = scmp.ne.s32.totalorder %s267, %s268
      %p279 = scmp.eq.s32.totalorder %s39, 0
      %p280 = por %p278, %p279
      %p281 = scmp.ne.s32.totalorder %s267, %s268
      %p282 = scmp.eq.s32.totalorder %s40, 3
      %p283 = por %p281, %p282
      %p285 = scmp.ne.s32.totalorder %s268, %s284
      %p286 = scmp.eq.s32.totalorder %s40, 0
      %p287 = por %p285, %p286
      %s288 = ssub.s32 %s42, %s49
      %p289 = scmp.eq.s32.totalorder %s288, 0
      %s291 = sadd.s32 %s290, 1
      %s292 = scalar_select %p289, %s290, %s291
      %p295 = pneg %p289
      %p296 = scmp.eq.s32.totalorder %s34, 3
      %p297 = por %p295, %p296
      %p298 = scmp.ne.s32.totalorder %s290, %s293
      %p299 = scmp.eq.s32.totalorder %s34, 0
      %p300 = por %p298, %p299
      %p301 = scmp.ne.s32.totalorder %s290, %s293
      %p302 = scmp.eq.s32.totalorder %s39, 3
      %p303 = por %p301, %p302
      %p304 = scmp.ne.s32.totalorder %s293, %s294
      %p305 = scmp.eq.s32.totalorder %s39, 0
      %p306 = por %p304, %p305
      %p307 = scmp.ne.s32.totalorder %s293, %s294
      %p308 = scmp.eq.s32.totalorder %s40, 3
      %p309 = por %p307, %p308
      %p311 = scmp.ne.s32.totalorder %s294, %s310
      %p312 = scmp.eq.s32.totalorder %s40, 0
      %p313 = por %p311, %p312
      %s315 = sadd.s32 %s314, 1
      %p318 = scmp.eq.s32.totalorder %s34, 3
      %p319 = scmp.ne.s32.totalorder %s314, %s316
      %p320 = scmp.eq.s32.totalorder %s34, 0
      %p321 = por %p319, %p320
      %p322 = scmp.ne.s32.totalorder %s314, %s316
      %p323 = scmp.eq.s32.totalorder %s39, 3
      %p324 = por %p322, %p323
      %p325 = scmp.ne.s32.totalorder %s316, %s317
      %p326 = scmp.eq.s32.totalorder %s39, 0
      %p327 = por %p325, %p326
      %p328 = scmp.ne.s32.totalorder %s316, %s317
      %p329 = scmp.eq.s32.totalorder %s40, 3
      %p330 = por %p328, %p329
      %p332 = scmp.ne.s32.totalorder %s317, %s331
      %p333 = scmp.eq.s32.totalorder %s40, 0
      %p334 = por %p332, %p333
      %s336 = sadd.s32 %s335, 1
      %p339 = scmp.eq.s32.totalorder %s34, 3
      %p340 = scmp.ne.s32.totalorder %s335, %s337
      %p341 = scmp.eq.s32.totalorder %s34, 0
      %p342 = por %p340, %p341
      %p343 = scmp.ne.s32.totalorder %s335, %s337
      %p344 = scmp.eq.s32.totalorder %s39, 3
      %p345 = por %p343, %p344
      %p346 = scmp.ne.s32.totalorder %s337, %s338
      %p347 = scmp.eq.s32.totalorder %s39, 0
      %p348 = por %p346, %p347
      %p349 = scmp.ne.s32.totalorder %s337, %s338
      %p350 = scmp.eq.s32.totalorder %s40, 3
      %p351 = por %p349, %p350
      %p353 = scmp.ne.s32.totalorder %s338, %s352
      %p354 = scmp.eq.s32.totalorder %s40, 0
      %p355 = por %p353, %p354
      %s357 = sadd.s32 %s356, 1
      %p360 = scmp.eq.s32.totalorder %s34, 3
      %p361 = scmp.ne.s32.totalorder %s356, %s358
      %p362 = scmp.eq.s32.totalorder %s34, 0
      %p363 = por %p361, %p362
      %p364 = scmp.ne.s32.totalorder %s356, %s358
      %p365 = scmp.eq.s32.totalorder %s39, 3
      %p366 = por %p364, %p365
      %p367 = scmp.ne.s32.totalorder %s358, %s359
      %p368 = scmp.eq.s32.totalorder %s39, 0
      %p369 = por %p367, %p368
      %p370 = scmp.ne.s32.totalorder %s358, %s359
      %p371 = scmp.eq.s32.totalorder %s40, 3
      %p372 = por %p370, %p371
      %p374 = scmp.ne.s32.totalorder %s359, %s373
      %p375 = scmp.eq.s32.totalorder %s40, 0
      %p376 = por %p374, %p375
      %s377 = ssub.s32 %s41, %s53
      %p378 = scmp.eq.s32.totalorder %s377, 0
      %s380 = sadd.s32 %s379, 1
      %s381 = scalar_select %p378, %s379, %s380
      %p384 = pneg %p378
      %p385 = scmp.eq.s32.totalorder %s34, 3
      %p386 = por %p384, %p385
      %p387 = scmp.ne.s32.totalorder %s379, %s382
      %p388 = scmp.eq.s32.totalorder %s34, 0
      %p389 = por %p387, %p388
      %p390 = scmp.ne.s32.totalorder %s379, %s382
      %p391 = scmp.eq.s32.totalorder %s39, 3
      %p392 = por %p390, %p391
      %p393 = scmp.ne.s32.totalorder %s382, %s383
      %p394 = scmp.eq.s32.totalorder %s39, 0
      %p395 = por %p393, %p394
      %p396 = scmp.ne.s32.totalorder %s382, %s383
      %p397 = scmp.eq.s32.totalorder %s40, 3
      %p398 = por %p396, %p397
      %p400 = scmp.ne.s32.totalorder %s383, %s399
      %p401 = scmp.eq.s32.totalorder %s40, 0
      %p402 = por %p400, %p401
      %s403 = ssub.s32 %s42, %s49
      %s404 = ssub.s32 %s41, %s53
      %s405 = sor.u32 %s403, %s404
      %p406 = scmp.eq.s32.totalorder %s405, 0
      %s408 = sadd.s32 %s407, 1
      %s409 = scalar_select %p406, %s407, %s408
      %p412 = pneg %p406
      %p413 = scmp.eq.s32.totalorder %s34, 3
      %p414 = por %p412, %p413
      %p415 = scmp.ne.s32.totalorder %s407, %s410
      %p416 = scmp.eq.s32.totalorder %s34, 0
      %p417 = por %p415, %p416
      %p418 = scmp.ne.s32.totalorder %s407, %s410
      %p419 = scmp.eq.s32.totalorder %s39, 3
      %p420 = por %p418, %p419
      %p421 = scmp.ne.s32.totalorder %s410, %s411
      %p422 = scmp.eq.s32.totalorder %s39, 0
      %p423 = por %p421, %p422
      %p424 = scmp.ne.s32.totalorder %s410, %s411
      %p425 = scmp.eq.s32.totalorder %s40, 3
      %p426 = por %p424, %p425
      %p428 = scmp.ne.s32.totalorder %s411, %s427
      %p429 = scmp.eq.s32.totalorder %s40, 0
      %p430 = por %p428, %p429
      %s431 = ssub.s32 %s42, %s49
      %s432 = ssub.s32 %s41, %s53
      %s433 = sor.u32 %s431, %s432
      %p434 = scmp.eq.s32.totalorder %s433, 0
      %s436 = sadd.s32 %s435, 1
      %s437 = scalar_select %p434, %s435, %s436
      %p440 = pneg %p434
      %p441 = scmp.eq.s32.totalorder %s34, 3
      %p442 = por %p440, %p441
      %p443 = scmp.ne.s32.totalorder %s435, %s438
      %p444 = scmp.eq.s32.totalorder %s34, 0
      %p445 = por %p443, %p444
      %p446 = scmp.ne.s32.totalorder %s435, %s438
      %p447 = scmp.eq.s32.totalorder %s39, 3
      %p448 = por %p446, %p447
      %p449 = scmp.ne.s32.totalorder %s438, %s439
      %p450 = scmp.eq.s32.totalorder %s39, 0
      %p451 = por %p449, %p450
      %p452 = scmp.ne.s32.totalorder %s438, %s439
      %p453 = scmp.eq.s32.totalorder %s40, 3
      %p454 = por %p452, %p453
      %p456 = scmp.ne.s32.totalorder %s439, %s455
      %p457 = scmp.eq.s32.totalorder %s40, 0
      %p458 = por %p456, %p457
      %p459 = scmp.le.s32.totalorder 1, %s34
      %p460 = scmp.lt.s32.totalorder %s34, 5
      %p461 = pnand %p459, %p460
      %p462 = pneg %p461
      // Predicated region
      $region9: #{tpu_custom_call.1} parent=5 // pred_check
        _
      $region10: #{tpu_custom_call.1} parent=5 // pred_check_branch
        %464 = sbr.rel (%p461) target = $region12
      $region11: #{tpu_custom_call.1} parent=5 // pred_region
        %s465 = ssub.s32 %s34, 1
        // Predicated region
        $region13: #{tpu_custom_call.1} parent=11 // pred_check
          %p466 = pneg %p327
        $region14: #{tpu_custom_call.1} parent=11 // pred_check_branch
          %468 = sbr.rel (%p466) target = $region16
        $region15: #{tpu_custom_call.1} parent=11 // pred_region
          _
        $region16: #{tpu_custom_call.1} parent=11 // pred_fallthru
          _
        // Predicated region
        $region17: #{tpu_custom_call.1} parent=11 // pred_check
          %p469 = pneg %p348
        $region18: #{tpu_custom_call.1} parent=11 // pred_check_branch
          %471 = sbr.rel (%p469) target = $region20
        $region19: #{tpu_custom_call.1} parent=11 // pred_region
          _
        $region20: #{tpu_custom_call.1} parent=11 // pred_fallthru
          _
        // Predicated region
        $region21: #{tpu_custom_call.1} parent=11 // pred_check
          %p472 = pneg %p369
        $region22: #{tpu_custom_call.1} parent=11 // pred_check_branch
          %474 = sbr.rel (%p472) target = $region24
        $region23: #{tpu_custom_call.1} parent=11 // pred_region
          _
        $region24: #{tpu_custom_call.1} parent=11 // pred_fallthru
          _
      $region12: #{tpu_custom_call.1} parent=5 // pred_fallthru
        _
      %p475 = scmp.lt.s32.totalorder %s34, 4
      // Predicated region
      $region25: #{tpu_custom_call.1} parent=5 // pred_check
        %p476 = pneg %p475
      $region26: #{tpu_custom_call.1} parent=5 // pred_check_branch
        %478 = sbr.rel (%p476) target = $region28
      $region27: #{tpu_custom_call.1} parent=5 // pred_region
        // Predicated region
        $region29: #{tpu_custom_call.1} parent=27 // pred_check
          %p479 = pneg %p66
        $region30: #{tpu_custom_call.1} parent=27 // pred_check_branch
          %481 = sbr.rel (%p479) target = $region32
        $region31: #{tpu_custom_call.1} parent=27 // pred_region
          %s482 = sand.u32 %s56, 1
          %s483 = scalar_lea.sflag [#allocation4], %s482
          %s484 = sand.u32 %s56, 1
          %s485 = smul.addr %s484, 8
          %s486 = scalar_lea.vmem [#allocation3], %s485
          %488 = vsyncadd %s483, 0
          %s489 = smul.addr %s41, 8
          %s490 = scalar_lea.hbm %s0, %s489
          %s492 = sshll.u32 %s490, 4
          %s493 = int_to_ptr.hbm [resolvable:$true] %s492
          %s494 = sshll.u32 %s486, 4
          %s495 = int_to_ptr.vmem [resolvable:$true] %s494
          %497 = dma.hbm_to_vmem [thread:$0]  %s493, 128, %s495, %s483
        $region32: #{tpu_custom_call.1} parent=27 // pred_fallthru
          _
        // Predicated region
        $region33: #{tpu_custom_call.1} parent=27 // pred_check
          %p498 = pneg %p92
        $region34: #{tpu_custom_call.1} parent=27 // pred_check_branch
          %500 = sbr.rel (%p498) target = $region36
        $region35: #{tpu_custom_call.1} parent=27 // pred_region
          %s501 = sand.u32 %s34, 1
          %s502 = scalar_lea.sflag [#allocation7], %s501
          %s503 = sand.u32 %s82, 1
          %s504 = smul.addr %s503, 8
          %s505 = scalar_lea.vmem [#allocation6], %s504
          %507 = vsyncadd %s502, 0
          %s508 = smul.addr %s41, 8
          %s509 = scalar_lea.hbm %s1, %s508
          %s511 = sshll.u32 %s509, 4
          %s512 = int_to_ptr.hbm [resolvable:$true] %s511
          %s513 = sshll.u32 %s505, 4
          %s514 = int_to_ptr.vmem [resolvable:$true] %s513
          %516 = dma.hbm_to_vmem [thread:$0]  %s512, 128, %s514, %s502
        $region36: #{tpu_custom_call.1} parent=27 // pred_fallthru
          _
        // Predicated region
        $region37: #{tpu_custom_call.1} parent=27 // pred_check
          %p517 = pneg %p118
        $region38: #{tpu_custom_call.1} parent=27 // pred_check_branch
          %519 = sbr.rel (%p517) target = $region40
        $region39: #{tpu_custom_call.1} parent=27 // pred_region
          %s520 = sand.u32 %s34, 1
          %s521 = scalar_lea.sflag [#allocation7], %s520
          %s522 = sand.u32 %s108, 1
          %s523 = smul.addr %s522, 8
          %s524 = scalar_lea.vmem [#allocation8], %s523
          %526 = vsyncadd %s521, 0
          %s527 = smul.addr %s41, 8
          %s528 = scalar_lea.hbm %s2, %s527
          %s530 = sshll.u32 %s528, 4
          %s531 = int_to_ptr.hbm [resolvable:$true] %s530
          %s532 = sshll.u32 %s524, 4
          %s533 = int_to_ptr.vmem [resolvable:$true] %s532
          %535 = dma.hbm_to_vmem [thread:$0]  %s531, 128, %s533, %s521
        $region40: #{tpu_custom_call.1} parent=27 // pred_fallthru
          _
        // Predicated region
        $region41: #{tpu_custom_call.1} parent=27 // pred_check
          %p536 = pneg %p144
        $region42: #{tpu_custom_call.1} parent=27 // pred_check_branch
          %538 = sbr.rel (%p536) target = $region44
        $region43: #{tpu_custom_call.1} parent=27 // pred_region
          %p539 = scmp.lt.s32.totalorder %s42, 1
          %s540 = scalar_select %p539, %s42, 1
          %s541 = smul.addr %s540, 2
          %s542 = smul.addr %s541, 8
          %s543 = scalar_lea.vmem %s3, %s542
        $region44: #{tpu_custom_call.1} parent=27 // pred_fallthru
          _
        // Predicated region
        $region45: #{tpu_custom_call.1} parent=27 // pred_check
          %p544 = pneg %p170
        $region46: #{tpu_custom_call.1} parent=27 // pred_check_branch
          %546 = sbr.rel (%p544) target = $region48
        $region47: #{tpu_custom_call.1} parent=27 // pred_region
          %p547 = scmp.lt.s32.totalorder %s42, 1
          %s548 = scalar_select %p547, %s42, 1
          %s549 = scalar_lea.vmem %s4, %s548
        $region48: #{tpu_custom_call.1} parent=27 // pred_fallthru
          _
        // Predicated region
        $region49: #{tpu_custom_call.1} parent=27 // pred_check
          %p550 = pneg %p196
        $region50: #{tpu_custom_call.1} parent=27 // pred_check_branch
          %552 = sbr.rel (%p550) target = $region52
        $region51: #{tpu_custom_call.1} parent=27 // pred_region
          %p553 = scmp.lt.s32.totalorder %s42, 1
          %s554 = scalar_select %p553, %s42, 1
          %s555 = smul.addr %s554, 2
          %s556 = smul.addr %s555, 8
          %s557 = scalar_lea.vmem %s5, %s556
        $region52: #{tpu_custom_call.1} parent=27 // pred_fallthru
          _
        // Predicated region
        $region53: #{tpu_custom_call.1} parent=27 // pred_check
          %p558 = pneg %p222
        $region54: #{tpu_custom_call.1} parent=27 // pred_check_branch
          %560 = sbr.rel (%p558) target = $region56
        $region55: #{tpu_custom_call.1} parent=27 // pred_region
          %p561 = scmp.lt.s32.totalorder %s42, 1
          %s562 = scalar_select %p561, %s42, 1
          %s563 = scalar_lea.vmem %s6, %s562
        $region56: #{tpu_custom_call.1} parent=27 // pred_fallthru
          _
        // Predicated region
        $region57: #{tpu_custom_call.1} parent=27 // pred_check
          %p564 = pneg %p248
        $region58: #{tpu_custom_call.1} parent=27 // pred_check_branch
          %566 = sbr.rel (%p564) target = $region60
        $region59: #{tpu_custom_call.1} parent=27 // pred_region
          %p567 = scmp.lt.s32.totalorder %s42, 1
          %s568 = scalar_select %p567, %s42, 1
          %s569 = smul.addr %s568, 2
          %s570 = smul.addr %s569, 8
          %s571 = scalar_lea.vmem %s7, %s570
        $region60: #{tpu_custom_call.1} parent=27 // pred_fallthru
          _
        // Predicated region
        $region61: #{tpu_custom_call.1} parent=27 // pred_check
          %p572 = pneg %p274
        $region62: #{tpu_custom_call.1} parent=27 // pred_check_branch
          %574 = sbr.rel (%p572) target = $region64
        $region63: #{tpu_custom_call.1} parent=27 // pred_region
          %p575 = scmp.lt.s32.totalorder %s42, 1
          %s576 = scalar_select %p575, %s42, 1
          %s577 = scalar_lea.vmem %s8, %s576
        $region64: #{tpu_custom_call.1} parent=27 // pred_fallthru
          _
        // Predicated region
        $region65: #{tpu_custom_call.1} parent=27 // pred_check
          %p578 = pneg %p300
        $region66: #{tpu_custom_call.1} parent=27 // pred_check_branch
          %580 = sbr.rel (%p578) target = $region68
        $region67: #{tpu_custom_call.1} parent=27 // pred_region
          %p581 = scmp.lt.s32.totalorder %s42, 1
          %s582 = scalar_select %p581, %s42, 1
          %s583 = smul.addr %s582, 4
          %s584 = smul.addr %s583, 8
          %s585 = scalar_lea.vmem %s9, %s584
        $region68: #{tpu_custom_call.1} parent=27 // pred_fallthru
          _
      $region28: #{tpu_custom_call.1} parent=5 // pred_fallthru
        _
      %p586 = scmp.le.s32.totalorder 1, %s34
      %p587 = scmp.lt.s32.totalorder %s34, 5
      %p588 = pnand %p586, %p587
      %p589 = pneg %p588
      // Predicated region
      $region69: #{tpu_custom_call.1} parent=5 // pred_check
        _
      $region70: #{tpu_custom_call.1} parent=5 // pred_check_branch
        %591 = sbr.rel (%p588) target = $region72
      $region71: #{tpu_custom_call.1} parent=5 // pred_region
        %s592 = ssub.s32 %s34, 1
        %s593 = sand.u32 %s59, 1
        %s594 = scalar_lea.sflag [#allocation4], %s593
        %s595 = sand.u32 %s59, 1
        %s596 = smul.addr %s595, 8
        %s597 = scalar_lea.vmem [#allocation3], %s596
        // Predicated region
        $region73: #{tpu_custom_call.1} parent=71 // pred_check
          %p598 = pneg %p72
        $region74: #{tpu_custom_call.1} parent=71 // pred_check_branch
          %600 = sbr.rel (%p598) target = $region76
        $region75: #{tpu_custom_call.1} parent=71 // pred_region
          %602 = dma.done %s594, 128
        $region76: #{tpu_custom_call.1} parent=71 // pred_fallthru
          _
        %s603 = sand.u32 %s39, 1
        %s604 = scalar_lea.sflag [#allocation7], %s603
        %s605 = sand.u32 %s85, 1
        %s606 = smul.addr %s605, 8
        %s607 = scalar_lea.vmem [#allocation6], %s606
        // Predicated region
        $region77: #{tpu_custom_call.1} parent=71 // pred_check
          %p608 = pneg %p98
        $region78: #{tpu_custom_call.1} parent=71 // pred_check_branch
          %610 = sbr.rel (%p608) target = $region80
        $region79: #{tpu_custom_call.1} parent=71 // pred_region
          %612 = dma.done %s604, 128
        $region80: #{tpu_custom_call.1} parent=71 // pred_fallthru
          _
        %s613 = sand.u32 %s39, 1
        %s614 = scalar_lea.sflag [#allocation7], %s613
        %s615 = sand.u32 %s111, 1
        %s616 = smul.addr %s615, 8
        %s617 = scalar_lea.vmem [#allocation8], %s616
        // Predicated region
        $region81: #{tpu_custom_call.1} parent=71 // pred_check
          %p618 = pneg %p124
        $region82: #{tpu_custom_call.1} parent=71 // pred_check_branch
          %620 = sbr.rel (%p618) target = $region84
        $region83: #{tpu_custom_call.1} parent=71 // pred_region
          %622 = dma.done %s614, 128
        $region84: #{tpu_custom_call.1} parent=71 // pred_fallthru
          _
        %s623 = sand.u32 %s59, 1
        %s624 = scalar_lea.sflag [#allocation4], %s623
        %s625 = sand.u32 %s59, 1
        %s626 = smul.addr %s625, 8
        %s627 = scalar_lea.vmem [#allocation3], %s626
        %p628 = pneg %p72
        %p629 = pneg %p69
        %s630 = sand.u32 %s39, 1
        %s631 = scalar_lea.sflag [#allocation7], %s630
        %s632 = sand.u32 %s85, 1
        %s633 = smul.addr %s632, 8
        %s634 = scalar_lea.vmem [#allocation6], %s633
        %p635 = pneg %p98
        %p636 = pneg %p95
        %s637 = sand.u32 %s39, 1
        %s638 = scalar_lea.sflag [#allocation7], %s637
        %s639 = sand.u32 %s111, 1
        %s640 = smul.addr %s639, 8
        %s641 = scalar_lea.vmem [#allocation8], %s640
        %p642 = pneg %p124
        %p643 = pneg %p121
        %p644 = scmp.lt.s32.totalorder %s44, 1
        %s645 = scalar_select %p644, %s44, 1
        %s646 = smul.addr %s645, 2
        %s647 = smul.addr %s646, 8
        %s648 = scalar_lea.vmem %s3, %s647
        %p649 = pneg %p150
        %p650 = pneg %p147
        %p651 = scmp.lt.s32.totalorder %s44, 1
        %s652 = scalar_select %p651, %s44, 1
        %s653 = scalar_lea.vmem %s4, %s652
        %p654 = pneg %p176
        %p655 = pneg %p173
        %p656 = scmp.lt.s32.totalorder %s44, 1
        %s657 = scalar_select %p656, %s44, 1
        %s658 = smul.addr %s657, 2
        %s659 = smul.addr %s658, 8
        %s660 = scalar_lea.vmem %s5, %s659
        %p661 = pneg %p202
        %p662 = pneg %p199
        %p663 = scmp.lt.s32.totalorder %s44, 1
        %s664 = scalar_select %p663, %s44, 1
        %s665 = scalar_lea.vmem %s6, %s664
        %p666 = pneg %p228
        %p667 = pneg %p225
        %p668 = scmp.lt.s32.totalorder %s44, 1
        %s669 = scalar_select %p668, %s44, 1
        %s670 = smul.addr %s669, 2
        %s671 = smul.addr %s670, 8
        %s672 = scalar_lea.vmem %s7, %s671
        %p673 = pneg %p254
        %p674 = pneg %p251
        %p675 = scmp.lt.s32.totalorder %s44, 1
        %s676 = scalar_select %p675, %s44, 1
        %s677 = scalar_lea.vmem %s8, %s676
        %p678 = pneg %p280
        %p679 = pneg %p277
        %p680 = scmp.lt.s32.totalorder %s44, 1
        %s681 = scalar_select %p680, %s44, 1
        %s682 = smul.addr %s681, 4
        %s683 = smul.addr %s682, 8
        %s684 = scalar_lea.vmem %s9, %s683
        %p685 = pneg %p306
        %p686 = pneg %p303
        %p687 = pneg %p327
        %p688 = pneg %p324
        %p689 = pneg %p348
        %p690 = pneg %p345
        %p691 = pneg %p369
        %p692 = pneg %p366
        %p693 = pneg %p395
        %p694 = pneg %p392
        %s695 = sand.u32 %s382, 1
        %s696 = scalar_lea.sflag [#allocation5], %s695
        %s697 = sand.u32 %s382, 1
        %s698 = smul.addr %s697, 8
        %s699 = scalar_lea.vmem [#allocation9], %s698
        %p700 = pneg %p423
        %p701 = pneg %p420
        %s702 = sand.u32 %s39, 1
        %s703 = scalar_lea.sflag [#allocation11], %s702
        %s704 = sand.u32 %s410, 1
        %s705 = smul.addr %s704, 8
        %s706 = scalar_lea.vmem [#allocation10], %s705
        %p707 = pneg %p451
        %p708 = pneg %p448
        %s709 = sand.u32 %s39, 1
        %s710 = scalar_lea.sflag [#allocation11], %s709
        %s711 = sand.u32 %s438, 1
        %s712 = smul.addr %s711, 8
        %s713 = scalar_lea.vmem [#allocation12], %s712
        %p714 = scmp.lt.s32.totalorder %s44, 1
        %s715 = scalar_select %p714, %s44, 1
        %s716 = smul.addr %s715, 2
        %s717 = smul.addr %s716, 8
        %s718 = scalar_lea.vmem %s3, %s717
        %p719 = scmp.lt.s32.totalorder %s44, 1
        %s720 = scalar_select %p719, %s44, 1
        %s721 = scalar_lea.vmem %s4, %s720
        %p722 = scmp.lt.s32.totalorder %s44, 1
        %s723 = scalar_select %p722, %s44, 1
        %s724 = smul.addr %s723, 2
        %s725 = smul.addr %s724, 8
        %s726 = scalar_lea.vmem %s5, %s725
        %p727 = scmp.lt.s32.totalorder %s44, 1
        %s728 = scalar_select %p727, %s44, 1
        %s729 = scalar_lea.vmem %s6, %s728
        %p730 = scmp.lt.s32.totalorder %s44, 1
        %s731 = scalar_select %p730, %s44, 1
        %s732 = smul.addr %s731, 2
        %s733 = smul.addr %s732, 8
        %s734 = scalar_lea.vmem %s7, %s733
        %p735 = scmp.lt.s32.totalorder %s44, 1
        %s736 = scalar_select %p735, %s44, 1
        %s737 = scalar_lea.vmem %s8, %s736
        %p738 = scmp.lt.s32.totalorder %s44, 1
        %s739 = scalar_select %p738, %s44, 1
        %s740 = smul.addr %s739, 4
        %s741 = smul.addr %s740, 8
        %s742 = scalar_lea.vmem %s9, %s741
        %v743 = vld [vmem:[%s597] sm:$0xff]
        %v744 = vld [vmem:[%s607] sm:$0xff]
        %v745 = vld [vmem:[%s617] sm:$0xff]
        %v746 = vld [vmem:[%s718] sm:$0xff]
        %v747 = vld [vmem:[%s718 + $0x8] sm:$0xff]
        %v748 = vld [vmem:[%s721] sm:$0x1]
        %v750 = vperm.slane %v748, 0
        %vm752 = vcmask 261120
        %v754 = vsel %vm752, %v743, 0
        %v757 = vsel %vm752, %v746, 0
        %v760 = vsel %vm752, %v747, 0
        %762 = vmatpush.xpose.msra.mxu0 0.0
        %763 = vmatpush.xpose.msra.mxu0 0.0
        %764 = vmatpush.xpose.msra.mxu0 0.0
        %765 = vmatpush.xpose.msra.mxu0 0.0
        %766 = vmatpush.xpose.msra.mxu0 0.0
        %767 = vmatpush.xpose.msra.mxu0 0.0
        %768 = vmatpush.xpose.msra.mxu0 0.0
        %769 = vmatpush.xpose.msra.mxu0 0.0
        %770 = vmatpush.xpose.msra.mxu0 0.0
        %771 = vmatpush.xpose.msra.mxu0 0.0
        %772 = vmatpush.xpose.msra.mxu0 0.0
        %773 = vmatpush.xpose.msra.mxu0 0.0
        %774 = vmatpush.xpose.msra.mxu0 0.0
        %775 = vmatpush.xpose.msra.mxu0 0.0
        %776 = vmatpush.xpose.msra.mxu0 %v760
        %777 = vmatpush.xpose.msra.mxu0 %v757
        %778 = vmatmul.f32.gmra.mxu0 %v754
        %v779 = vpop.f32.mrf.mxu0
        %v780 = vadd.f32 %v750, %v779
        %781 = vdwg.mxu0
        %v782 = vld [vmem:[%s726] sm:$0xff]
        %v783 = vld [vmem:[%s726 + $0x8] sm:$0xff]
        %v784 = vld [vmem:[%s729] sm:$0x1]
        %v786 = vperm.slane %v784, 0
        %v789 = vsel %vm752, %v744, 0
        %v792 = vsel %vm752, %v782, 0
        %v795 = vsel %vm752, %v783, 0
        %797 = vmatpush.xpose.msra.mxu0 0.0
        %798 = vmatpush.xpose.msra.mxu0 0.0
        %799 = vmatpush.xpose.msra.mxu0 0.0
        %800 = vmatpush.xpose.msra.mxu0 0.0
        %801 = vmatpush.xpose.msra.mxu0 0.0
        %802 = vmatpush.xpose.msra.mxu0 0.0
        %803 = vmatpush.xpose.msra.mxu0 0.0
        %804 = vmatpush.xpose.msra.mxu0 0.0
        %805 = vmatpush.xpose.msra.mxu0 0.0
        %806 = vmatpush.xpose.msra.mxu0 0.0
        %807 = vmatpush.xpose.msra.mxu0 0.0
        %808 = vmatpush.xpose.msra.mxu0 0.0
        %809 = vmatpush.xpose.msra.mxu0 0.0
        %810 = vmatpush.xpose.msra.mxu0 0.0
        %811 = vmatpush.xpose.msra.mxu0 %v795
        %812 = vmatpush.xpose.msra.mxu0 %v792
        %813 = vmatmul.f32.gmra.mxu0 %v789
        %v814 = vpop.f32.mrf.mxu0
        %v815 = vadd.f32 %v786, %v814
        %816 = vdwg.mxu0
        %v817 = vld [vmem:[%s734] sm:$0xff]
        %v818 = vld [vmem:[%s734 + $0x8] sm:$0xff]
        %v819 = vld [vmem:[%s737] sm:$0x1]
        %v821 = vperm.slane %v819, 0
        %v824 = vsel %vm752, %v745, 0
        %v827 = vsel %vm752, %v817, 0
        %v830 = vsel %vm752, %v818, 0
        %832 = vmatpush.xpose.msra.mxu0 0.0
        %833 = vmatpush.xpose.msra.mxu0 0.0
        %834 = vmatpush.xpose.msra.mxu0 0.0
        %835 = vmatpush.xpose.msra.mxu0 0.0
        %836 = vmatpush.xpose.msra.mxu0 0.0
        %837 = vmatpush.xpose.msra.mxu0 0.0
        %838 = vmatpush.xpose.msra.mxu0 0.0
        %839 = vmatpush.xpose.msra.mxu0 0.0
        %840 = vmatpush.xpose.msra.mxu0 0.0
        %841 = vmatpush.xpose.msra.mxu0 0.0
        %842 = vmatpush.xpose.msra.mxu0 0.0
        %843 = vmatpush.xpose.msra.mxu0 0.0
        %844 = vmatpush.xpose.msra.mxu0 0.0
        %845 = vmatpush.xpose.msra.mxu0 0.0
        %846 = vmatpush.xpose.msra.mxu0 %v830
        %847 = vmatpush.xpose.msra.mxu0 %v827
        %848 = vmatmul.f32.gmra.mxu0 %v824
        %v849 = vpop.f32.mrf.mxu0
        %v850 = vadd.f32 %v821, %v849
        %851 = vdwg.mxu0
        %vm852 = vcmask 130048
        %v854 = vsel %vm852, %v780, 0
        %v857 = vsel %vm852, %v815, 0
        %859 = vmatpush.xpose.msra.mxu0 0.0
        %860 = vmatpush.xpose.msra.mxu0 0.0
        %861 = vmatpush.xpose.msra.mxu0 0.0
        %862 = vmatpush.xpose.msra.mxu0 0.0
        %863 = vmatpush.xpose.msra.mxu0 0.0
        %864 = vmatpush.xpose.msra.mxu0 0.0
        %865 = vmatpush.xpose.msra.mxu0 0.0
        %866 = vmatpush.xpose.msra.mxu0 0.0
        %867 = vmatpush.xpose.msra.mxu0 0.0
        %868 = vmatpush.xpose.msra.mxu0 0.0
        %869 = vmatpush.xpose.msra.mxu0 0.0
        %870 = vmatpush.xpose.msra.mxu0 0.0
        %871 = vmatpush.xpose.msra.mxu0 0.0
        %872 = vmatpush.xpose.msra.mxu0 0.0
        %873 = vmatpush.xpose.msra.mxu0 0.0
        %874 = vmatpush.xpose.msra.mxu0 %v857
        %875 = vmatmul.f32.gmra.mxu0 %v854
        %v876 = vpop.f32.mrf.mxu0
        %v877 = vadd.f32 0.0, %v876
        %878 = vdwg.mxu0
        %vm879 = vcmask 64512
        %v880 = vsel %vm879, %v877, -inf
        %881 = vmax.xlane.f32.xlu0 %v880
        %v882 = vpop.xlane.xlu0 %881
        %v883 = vsub.f32 %v877, %v882
        %v884 = vmul.f32 %v883, 1.442695
        %v885 = vpow.pop %v884
        %v886 = vsel %vm879, %v885, 0.0
        %887 = vadd.xlane.f32.xlu0 %v886
        %v888 = vpop.xlane.xlu0 %887
        %v889 = vrcp.pop %v888
        %v890 = vmul.f32 %v888, %v889
        %v891 = vsub.f32 1.0, %v890
        %v892 = vmul.f32 %v889, %v891
        %v893 = vadd.f32 %v889, %v892
        %vm894 = vweird.f32 %v888
        %vm895 = vweird.f32 %v889
        %vm896 = vmor %vm894, %vm895
        %v897 = vsel %vm896, %v889, %v893
        %v898 = vand.u32 2147483647, %v888
        %vm899 = vcmp.eq.f32.partialorder %v898, 8.507059e+37
        %v900 = vand.u32 %v888, 2147483648
        %v901 = vor.u32 1.1754944e-38, %v900
        %v902 = vsel %vm899, %v901, %v897
        %v903 = vmul.f32 %v885, %v902
        %v904 = vlog2.pop %v888
        %v905 = vmul.f32 %v904, 0.6931472
        %v906 = vsub.f32 %v883, %v905
        %907 = vst.msk [vmem:[%s706] sm:$0xff] %vm879, %v903
        %908 = vst.msk [vmem:[%s713] sm:$0xff] %vm879, %v906
        %v910 = vsel %vm879, %v903, 0
        %912 = vmatpush.msra.mxu0 0.0
        %913 = vmatpush.msra.mxu0 0.0
        %914 = vmatpush.msra.mxu0 0.0
        %915 = vmatpush.msra.mxu0 0.0
        %916 = vmatpush.msra.mxu0 0.0
        %917 = vmatpush.msra.mxu0 0.0
        %918 = vmatpush.msra.mxu0 0.0
        %919 = vmatpush.msra.mxu0 0.0
        %920 = vmatpush.msra.mxu0 0.0
        %921 = vmatpush.msra.mxu0 0.0
        %922 = vmatpush.msra.mxu0 0.0
        %923 = vmatpush.msra.mxu0 0.0
        %924 = vmatpush.msra.mxu0 0.0
        %925 = vmatpush.msra.mxu0 0.0
        %926 = vmatpush.msra.mxu0 0.0
        %927 = vmatpush.msra.mxu0 %v850
        %928 = vmatmul.f32.gmra.mxu0 %v910
        %v929 = vpop.f32.mrf.mxu0
        %v930 = vadd.f32 0.0, %v929
        %931 = vdwg.mxu0
        %v932 = vld [vmem:[%s742] sm:$0xff]
        %v933 = vld [vmem:[%s742 + $0x8] sm:$0xff]
        %v934 = vld [vmem:[%s742 + $0x10] sm:$0xff]
        %v935 = vld [vmem:[%s742 + $0x18] sm:$0xff]
        %v937 = vsel %vm852, %v930, 0
        %v940 = vsel %vm852, %v932, 0
        %v943 = vsel %vm852, %v933, 0
        %v946 = vsel %vm852, %v934, 0
        %v949 = vsel %vm852, %v935, 0
        %951 = vmatpush.xpose.msra.mxu0 0.0
        %952 = vmatpush.xpose.msra.mxu0 0.0
        %953 = vmatpush.xpose.msra.mxu0 0.0
        %954 = vmatpush.xpose.msra.mxu0 0.0
        %955 = vmatpush.xpose.msra.mxu0 0.0
        %956 = vmatpush.xpose.msra.mxu0 0.0
        %957 = vmatpush.xpose.msra.mxu0 0.0
        %958 = vmatpush.xpose.msra.mxu0 0.0
        %959 = vmatpush.xpose.msra.mxu0 0.0
        %960 = vmatpush.xpose.msra.mxu0 0.0
        %961 = vmatpush.xpose.msra.mxu0 0.0
        %962 = vmatpush.xpose.msra.mxu0 0.0
        %963 = vmatpush.xpose.msra.mxu0 %v949
        %964 = vmatpush.xpose.msra.mxu0 %v946
        %965 = vmatpush.xpose.msra.mxu0 %v943
        %966 = vmatpush.xpose.msra.mxu0 %v940
        %967 = vmatmul.f32.gmra.mxu0 %v937
        %v968 = vpop.f32.mrf.mxu0
        %v969 = vadd.f32 0.0, %v968
        %970 = vdwg.mxu0
        %p971 = scmp.eq.s32.totalorder %s44, 0
        // Predicated region
        $region85: #{tpu_custom_call.1} parent=71 // pred_check
          %p972 = pneg %p971
        $region86: #{tpu_custom_call.1} parent=71 // pred_check_branch
          %974 = sbr.rel (%p972) target = $region88
        $region87: #{tpu_custom_call.1} parent=71 // pred_region
          %975 = vst.msk [vmem:[#allocation2] sm:$0xff] %vm752, 0.0
        $region88: #{tpu_custom_call.1} parent=71 // pred_fallthru
          _
        %v976 = vld [vmem:[#allocation2] sm:$0xff]
        %v977 = vadd.f32 %v976, %v969
        %978 = vst.msk [vmem:[#allocation2] sm:$0xff] %vm752, %v977
        %p979 = scmp.eq.s32.totalorder %s44, 1
        // Predicated region
        $region89: #{tpu_custom_call.1} parent=71 // pred_check
          %p980 = pneg %p979
        $region90: #{tpu_custom_call.1} parent=71 // pred_check_branch
          %982 = sbr.rel (%p980) target = $region92
        $region91: #{tpu_custom_call.1} parent=71 // pred_region
          %v983 = vld [vmem:[#allocation2] sm:$0xff]
          %v984 = vld [vmem:[%s10] sm:$0x1]
          %v986 = vperm.slane %v984, 0
          %v988 = vadd.f32 %v983, %v986
          %v989 = vadd.f32 %v988, %v743
          %v990 = vsel %vm752, %v989, 0.0
          %991 = vadd.xlane.f32.xlu0 %v990
          %v992 = vpop.xlane.xlu0 %991
          %v993 = vrcp.pop 32.0
          %v994 = vmul.f32 32.0, %v993
          %v995 = vsub.f32 1.0, %v994
          %v996 = vmul.f32 %v993, %v995
          %v997 = vadd.f32 %v993, %v996
          %vm998 = vweird.f32 %v993
          %v999 = vsel %vm998, %v993, %v997
          %v1000 = vmul.f32 %v992, %v999
          %v1001 = vsub.f32 %v989, %v1000
          %v1002 = vmul.f32 %v1001, %v1001
          %v1003 = vsel %vm752, %v1002, 0.0
          %1004 = vadd.xlane.f32.xlu0 %v1003
          %v1005 = vpop.xlane.xlu0 %1004
          %v1006 = vmul.f32 %v1005, %v999
          %v1007 = vadd.f32 %v1006, 1e-05
          %v1008 = vrsqrt.pop %v1007
          %v1009 = vmul.f32 %v1008, %v1007
          %v1010 = vmul.f32 %v1009, %v1008
          %v1011 = vmul.f32 0.5, %v1010
          %v1012 = vsub.f32 1.5, %v1011
          %v1013 = vmul.f32 %v1008, %v1012
          %vm1014 = vweird.f32 %v1007
          %vm1015 = vweird.f32 %v1008
          %vm1016 = vmor %vm1014, %vm1015
          %v1017 = vsel %vm1016, %v1008, %v1013
          %v1018 = vmul.f32 %v1001, %v1017
          %v1019 = vld [vmem:[%s11] sm:$0x1]
          %v1021 = vperm.slane %v1019, 0
          %v1023 = vmul.f32 %v1018, %v1021
          %v1024 = vld [vmem:[%s12] sm:$0x1]
          %v1026 = vperm.slane %v1024, 0
          %v1028 = vadd.f32 %v1023, %v1026
          %1029 = vst.msk [vmem:[%s699] sm:$0xff] %vm752, %v1028
        $region92: #{tpu_custom_call.1} parent=71 // pred_fallthru
          _
        %s1030 = sand.u32 %s382, 1
        %s1031 = scalar_lea.sflag [#allocation5], %s1030
        %s1032 = sand.u32 %s382, 1
        %s1033 = smul.addr %s1032, 8
        %s1034 = scalar_lea.vmem [#allocation9], %s1033
        %s1035 = sand.u32 %s39, 1
        %s1036 = scalar_lea.sflag [#allocation11], %s1035
        %s1037 = sand.u32 %s410, 1
        %s1038 = smul.addr %s1037, 8
        %s1039 = scalar_lea.vmem [#allocation10], %s1038
        %s1040 = sand.u32 %s39, 1
        %s1041 = scalar_lea.sflag [#allocation11], %s1040
        %s1042 = sand.u32 %s438, 1
        %s1043 = smul.addr %s1042, 8
        %s1044 = scalar_lea.vmem [#allocation12], %s1043
        // Predicated region
        $region93: #{tpu_custom_call.1} parent=71 // pred_check
          %p1045 = pneg %p392
        $region94: #{tpu_custom_call.1} parent=71 // pred_check_branch
          %1047 = sbr.rel (%p1045) target = $region96
        $region95: #{tpu_custom_call.1} parent=71 // pred_region
          %1049 = vsyncadd %s1031, 0
          %s1050 = smul.addr %s43, 8
          %s1051 = scalar_lea.hbm %s13, %s1050
          %s1053 = sshll.u32 %s1034, 4
          %s1054 = int_to_ptr.vmem [resolvable:$true] %s1053
          %s1055 = sshll.u32 %s1051, 4
          %s1056 = int_to_ptr.hbm [resolvable:$true] %s1055
          %1058 = dma.vmem_to_hbm [thread:$0]  %s1054, 128, %s1056, %s1031
        $region96: #{tpu_custom_call.1} parent=71 // pred_fallthru
          _
        // Predicated region
        $region97: #{tpu_custom_call.1} parent=71 // pred_check
          %p1059 = pneg %p420
        $region98: #{tpu_custom_call.1} parent=71 // pred_check_branch
          %1061 = sbr.rel (%p1059) target = $region100
        $region99: #{tpu_custom_call.1} parent=71 // pred_region
          %1063 = vsyncadd %s1036, 0
          %s1064 = smul.addr %s44, 2
          %s1065 = sadd.s32 %s43, %s1064
          %s1066 = smul.addr %s1065, 8
          %s1067 = scalar_lea.hbm %s14, %s1066
          %s1069 = sshll.u32 %s1039, 4
          %s1070 = int_to_ptr.vmem [resolvable:$true] %s1069
          %s1071 = sshll.u32 %s1067, 4
          %s1072 = int_to_ptr.hbm [resolvable:$true] %s1071
          %1074 = dma.vmem_to_hbm [thread:$0]  %s1070, 128, %s1072, %s1036
        $region100: #{tpu_custom_call.1} parent=71 // pred_fallthru
          _
        // Predicated region
        $region101: #{tpu_custom_call.1} parent=71 // pred_check
          %p1075 = pneg %p448
        $region102: #{tpu_custom_call.1} parent=71 // pred_check_branch
          %1077 = sbr.rel (%p1075) target = $region104
        $region103: #{tpu_custom_call.1} parent=71 // pred_region
          %1079 = vsyncadd %s1041, 0
          %s1080 = smul.addr %s44, 2
          %s1081 = sadd.s32 %s43, %s1080
          %s1082 = smul.addr %s1081, 8
          %s1083 = scalar_lea.hbm %s15, %s1082
          %s1085 = sshll.u32 %s1044, 4
          %s1086 = int_to_ptr.vmem [resolvable:$true] %s1085
          %s1087 = sshll.u32 %s1083, 4
          %s1088 = int_to_ptr.hbm [resolvable:$true] %s1087
          %1090 = dma.vmem_to_hbm [thread:$0]  %s1086, 128, %s1088, %s1041
        $region104: #{tpu_custom_call.1} parent=71 // pred_fallthru
          _
      $region72: #{tpu_custom_call.1} parent=5 // pred_fallthru
        _
      %p1091 = scmp.le.s32.totalorder 2, %s34
      // Predicated region
      $region105: #{tpu_custom_call.1} parent=5 // pred_check
        %p1092 = pneg %p1091
      $region106: #{tpu_custom_call.1} parent=5 // pred_check_branch
        %1094 = sbr.rel (%p1092) target = $region108
      $region107: #{tpu_custom_call.1} parent=5 // pred_region
        %s1095 = ssub.s32 %s34, 2
        // Predicated region
        $region109: #{tpu_custom_call.1} parent=107 // pred_check
          %p1096 = pneg %p398
        $region110: #{tpu_custom_call.1} parent=107 // pred_check_branch
          %1098 = sbr.rel (%p1096) target = $region112
        $region111: #{tpu_custom_call.1} parent=107 // pred_region
          %s1099 = sand.u32 %s383, 1
          %s1100 = scalar_lea.sflag [#allocation5], %s1099
          %s1101 = sand.u32 %s383, 1
          %s1102 = smul.addr %s1101, 8
          %s1103 = scalar_lea.vmem [#allocation9], %s1102
          %1105 = dma.done %s1100, 128
        $region112: #{tpu_custom_call.1} parent=107 // pred_fallthru
          _
        // Predicated region
        $region113: #{tpu_custom_call.1} parent=107 // pred_check
          %p1106 = pneg %p426
        $region114: #{tpu_custom_call.1} parent=107 // pred_check_branch
          %1108 = sbr.rel (%p1106) target = $region116
        $region115: #{tpu_custom_call.1} parent=107 // pred_region
          %s1109 = sand.u32 %s40, 1
          %s1110 = scalar_lea.sflag [#allocation11], %s1109
          %s1111 = sand.u32 %s411, 1
          %s1112 = smul.addr %s1111, 8
          %s1113 = scalar_lea.vmem [#allocation10], %s1112
          %1115 = dma.done %s1110, 128
        $region116: #{tpu_custom_call.1} parent=107 // pred_fallthru
          _
        // Predicated region
        $region117: #{tpu_custom_call.1} parent=107 // pred_check
          %p1116 = pneg %p454
        $region118: #{tpu_custom_call.1} parent=107 // pred_check_branch
          %1118 = sbr.rel (%p1116) target = $region120
        $region119: #{tpu_custom_call.1} parent=107 // pred_region
          %s1119 = sand.u32 %s40, 1
          %s1120 = scalar_lea.sflag [#allocation11], %s1119
          %s1121 = sand.u32 %s439, 1
          %s1122 = smul.addr %s1121, 8
          %s1123 = scalar_lea.vmem [#allocation12], %s1122
          %1125 = dma.done %s1120, 128
        $region120: #{tpu_custom_call.1} parent=107 // pred_fallthru
          _
      $region108: #{tpu_custom_call.1} parent=5 // pred_fallthru
        _
    $region6: #{tpu_custom_call.1} parent=1 // loop_footer
      %s38 = sadd.s32 1, %s34
    $region7: #{tpu_custom_call.1} parent=1 // loop_footer_branch
      %33 = sbr.rel target = $region3
    $region8: #{tpu_custom_call.1} parent=1 // loop_exit
      _
    %1126 = vsyncpa [#allocation4], 1
    %s1127 = scalar_lea.sflag [#allocation4], 1
    %1128 = vsyncpa %s1127, 1
    %1129 = vsyncpa [#allocation7], 1
    %s1130 = scalar_lea.sflag [#allocation7], 1
    %1131 = vsyncpa %s1130, 1
    %1132 = vsyncpa [#allocation5], 1
    %s1133 = scalar_lea.sflag [#allocation5], 1
    %1134 = vsyncpa %s1133, 1
    %1135 = vsyncpa [#allocation11], 1
    %s1136 = scalar_lea.sflag [#allocation11], 1
    %1137 = vsyncpa %s1136, 1

</llo_original>
